<compile_context>
chip_gen: v7x
topology: tpu7x:2x2x1
jax: 0.10.0
libtpu: 0.0.40
codegen_flags: <defaults>
</compile_context>

<pallas_src>
import jax
import jax.numpy as jnp
from jax.experimental import pallas as pl
from jax.experimental.pallas import tpu as pltpu


def _sdne_prox_loss_kernel(pos_i_ref, pos_j_ref, rn_i_ref, rn_j_ref,
                           simg_ref, out_ref, acc_ref):
    """One (tm, tn) tile of the pairwise loss, reduced over the j grid axis.

    pos_i_ref : (tm, K)  f32  row block of positions              (indexed by i)
    pos_j_ref : (tn, K)  f32  column block of positions           (indexed by j)
    rn_i_ref  : (tm, 1)  f32  squared row norms, row block        (indexed by i)
    rn_j_ref  : (1, tn)  f32  squared row norms, column block     (indexed by j)
    simg_ref  : (tm, tn) f32  pre-gathered similarity[:, indecies] tile (i, j)
    out_ref   : (1, 128) f32  per-row-block partial loss (lane-broadcast)
    acc_ref   : (1, 1)   f32  VMEM scratch accumulator
    """
    j = pl.program_id(1)

    @pl.when(j == 0)
    def _init():
        acc_ref[...] = jnp.zeros_like(acc_ref)

    # Pairwise Euclidean distances for this tile via the MXU:
    #   d_ab^2 = ||x_a||^2 + ||x_b||^2 - 2 <x_a, x_b>
    # (kept in f32: the cancellation-prone formula is not bf16-safe).
    gram = jax.lax.dot_general(
        pos_i_ref[...], pos_j_ref[...],
        dimension_numbers=(((1,), (1,)), ((), ())),
        preferred_element_type=jnp.float32)                       # (tm, tn)
    d2 = rn_i_ref[...] + rn_j_ref[...] - 2.0 * gram
    distances = jnp.sqrt(jnp.maximum(d2, 0.0))                    # (tm, tn)

    sim_tile = simg_ref[...]                                      # (tm, tn)
    cut_sim = 1.0 - sim_tile
    # loss tile = | (1 - cut_sim) * (distances - cut_sim)^2 |
    term = jnp.abs(sim_tile * jnp.square(distances - cut_sim))
    # Lane reduce then sublane reduce -> (1, 1) tile-local partial sum (XLU;
    # cheap relative to the VPU elementwise work above).
    tile_sum = jnp.sum(jnp.sum(term, axis=1, keepdims=True), axis=0,
                       keepdims=True)
    acc_ref[...] += tile_sum

    @pl.when(j == pl.num_programs(1) - 1)
    def _finalize():
        out_ref[...] = jnp.broadcast_to(acc_ref[...], out_ref.shape)


def _pick_tile(n, preferred, align):
    """Largest MXU/lane-friendly tile dividing n, else the full extent."""
    for t in (preferred, 512, 256, 128):
        if t <= n and n % t == 0 and t % align == 0:
            return t
    return n  # full array dim is always a legal block size


def sdne_proximity_loss(positions, similarity, indecies, *, tm=512, tn=512):
    """positions: (N, K), similarity: (N, M), indecies: (N,) int -> scalar loss."""
    positions = positions.astype(jnp.float32)
    similarity = similarity.astype(jnp.float32)
    idx = indecies.astype(jnp.int32)

    n, k = positions.shape

    tm = _pick_tile(n, tm, 8)     # sublane-aligned row tile
    tn = _pick_tile(n, tn, 128)   # lane-aligned column tile
    gi = n // tm
    gj = n // tn

    # Hoisted squared row norms (avoid per-tile recompute + sublane->lane move).
    row_norms = jnp.sum(positions * positions, axis=1, keepdims=True)   # (N, 1)
    row_norms_t = row_norms.reshape(1, n)                               # (1, N)

    # Column gather done once as a single XLA gather; the kernel then streams
    # plain (tm, tn) tiles of it (no O(N^2 * M) one-hot matmul, no (tm, M)
    # VMEM slab).
    sim_g = jnp.take(similarity, idx, axis=1)                           # (N, N)

    partials = pl.pallas_call(
        _sdne_prox_loss_kernel,
        out_shape=jax.ShapeDtypeStruct((1, gi * 128), jnp.float32),
        grid=(gi, gj),
        in_specs=[
            pl.BlockSpec((tm, k), lambda i, j: (i, 0)),    # positions row block
            pl.BlockSpec((tn, k), lambda i, j: (j, 0)),    # positions col block
            pl.BlockSpec((tm, 1), lambda i, j: (i, 0)),    # ||x||^2 row block
            pl.BlockSpec((1, tn), lambda i, j: (0, j)),    # ||x||^2 col block
            pl.BlockSpec((tm, tn), lambda i, j: (i, j)),   # gathered similarity
        ],
        out_specs=pl.BlockSpec((1, 128), lambda i, j: (0, i)),
        scratch_shapes=[pltpu.VMEM((1, 1), jnp.float32)],
        compiler_params=pltpu.CompilerParams(
            dimension_semantics=("parallel", "arbitrary"),
            vmem_limit_bytes=32 * 1024 * 1024,
        ),
    )(positions, positions, row_norms, row_norms_t, sim_g)

    # Tiny final reduction over per-row-block partials (lane 0 of each block).
    return jnp.sum(partials.reshape(gi, 128)[:, 0])


def _reference_loss(positions, similarity, indecies):
    # Pure-JAX reference of the same forward semantics.
    d2 = jnp.sum((positions[:, None, :] - positions[None, :, :]) ** 2, axis=-1)
    distances = jnp.sqrt(jnp.maximum(d2, 0.0))
    cut_sim = 1.0 - similarity[:, indecies]
    return jnp.sum(jnp.abs((1.0 - cut_sim) * jnp.square(distances - cut_sim)))


if __name__ == "__main__":
    key = jax.random.PRNGKey(0)
    k_pos, k_sim, k_idx = jax.random.split(key, 3)

    N, K, M = 512, 32, 384   # batch nodes, embedding dim, total graph nodes
    positions = jax.random.normal(k_pos, (N, K), dtype=jnp.float32)
    similarity = jax.random.uniform(k_sim, (N, M), dtype=jnp.float32)
    indecies = jax.random.randint(k_idx, (N,), 0, M, dtype=jnp.int32)

    # Use 256-tiles here so the small demo shape exercises a full 2x2 grid
    # (init/accumulate/finalize over j, parallel partials over i).
    loss = sdne_proximity_loss(positions, similarity, indecies, tm=256, tn=256)
    loss = jax.block_until_ready(loss)

    ref = jax.block_until_ready(_reference_loss(positions, similarity, indecies))
    assert jnp.allclose(loss, ref, rtol=5e-3, atol=1e-2), (loss, ref)

    print("KERNEL_OK")
</pallas_src>

<mosaic_0001>
module attributes {stable_mosaic.version = 11 : i64} {
  func.func @_sdne_prox_loss_kernel(%arg0: i32, %arg1: i32, %arg2: memref<256x32xf32, #tpu.memory_space<vmem>>, %arg3: memref<256x32xf32, #tpu.memory_space<vmem>>, %arg4: memref<256x1xf32, #tpu.memory_space<vmem>>, %arg5: memref<1x256xf32, #tpu.memory_space<vmem>>, %arg6: memref<256x256xf32, #tpu.memory_space<vmem>>, %arg7: memref<1x128xf32, #tpu.memory_space<vmem>>, %arg8: memref<1x1xf32, #tpu.memory_space<vmem>>) attributes {dimension_semantics = [#tpu.dimension_semantics<parallel>, #tpu.dimension_semantics<arbitrary>], iteration_bounds = array<i64: 2, 2>, scalar_prefetch = 0 : i64, scratch_operands = 1 : i64, tpu.core_type = #tpu.core_type<tc>, window_params = [{transform_indices = @transform_0, window_bounds = array<i64: 256, 32>}, {transform_indices = @transform_1, window_bounds = array<i64: 256, 32>}, {transform_indices = @transform_2, window_bounds = array<i64: 256, 1>}, {transform_indices = @transform_3, window_bounds = array<i64: 1, 256>}, {transform_indices = @transform_4, window_bounds = array<i64: 256, 256>}, {transform_indices = @transform_5, window_bounds = array<i64: 1, 128>}]} {
    %c0_i32 = arith.constant 0 : i32
    %0 = arith.cmpi eq, %arg1, %c0_i32 : i32
    %1 = arith.extui %0 : i1 to i32
    %c0_i32_0 = arith.constant 0 : i32
    %2 = arith.cmpi ne, %1, %c0_i32_0 : i32
    scf.if %2 {
      %cst_20 = arith.constant 0.000000e+00 : f32
      %34 = vector.broadcast %cst_20 : f32 to vector<1x1xf32>
      %c0_21 = arith.constant 0 : index
      %c0_22 = arith.constant 0 : index
      %35 = vector.load %arg8[%c0_21, %c0_22] : memref<1x1xf32, #tpu.memory_space<vmem>>, vector<1x1xf32>
      tpu.vector_store %arg8[%c0_21, %c0_22], %34 {strides = array<i32>} : memref<1x1xf32, #tpu.memory_space<vmem>>, vector<1x1xf32>,
    } else {
    }
    %c0 = arith.constant 0 : index
    %c0_1 = arith.constant 0 : index
    %3 = vector.load %arg2[%c0, %c0_1] : memref<256x32xf32, #tpu.memory_space<vmem>>, vector<256x32xf32>
    %c0_2 = arith.constant 0 : index
    %c0_3 = arith.constant 0 : index
    %4 = vector.load %arg3[%c0_2, %c0_3] : memref<256x32xf32, #tpu.memory_space<vmem>>, vector<256x32xf32>
    %cst = arith.constant dense<0.000000e+00> : vector<256x256xf32>
    %5 = tpu.matmul %3, %4, %cst {dimension_numbers = #tpu.dot_dimension_numbers<[1], [1], [0], [0], [0, 0, 1, 0], [], []>} : vector<256x32xf32>, vector<256x32xf32>, vector<256x256xf32> -> vector<256x256xf32>
    %c0_4 = arith.constant 0 : index
    %c0_5 = arith.constant 0 : index
    %6 = vector.load %arg4[%c0_4, %c0_5] : memref<256x1xf32, #tpu.memory_space<vmem>>, vector<256x1xf32>
    %c0_6 = arith.constant 0 : index
    %c0_7 = arith.constant 0 : index
    %7 = vector.load %arg5[%c0_6, %c0_7] : memref<1x256xf32, #tpu.memory_space<vmem>>, vector<1x256xf32>
    %8 = vector.broadcast %6 : vector<256x1xf32> to vector<256x256xf32>
    %9 = vector.broadcast %7 : vector<1x256xf32> to vector<256x256xf32>
    %10 = arith.addf %8, %9 : vector<256x256xf32>
    %cst_8 = arith.constant 2.000000e+00 : f32
    %11 = vector.broadcast %cst_8 : f32 to vector<256x256xf32>
    %12 = arith.mulf %11, %5 : vector<256x256xf32>
    %13 = arith.subf %10, %12 : vector<256x256xf32>
    %cst_9 = arith.constant 0.000000e+00 : f32
    %14 = vector.broadcast %cst_9 : f32 to vector<256x256xf32>
    %15 = arith.maximumf %13, %14 : vector<256x256xf32>
    %16 = math.sqrt %15 : vector<256x256xf32>
    %c0_10 = arith.constant 0 : index
    %c0_11 = arith.constant 0 : index
    %17 = vector.load %arg6[%c0_10, %c0_11] : memref<256x256xf32, #tpu.memory_space<vmem>>, vector<256x256xf32>
    %cst_12 = arith.constant 1.000000e+00 : f32
    %18 = vector.broadcast %cst_12 : f32 to vector<256x256xf32>
    %19 = arith.subf %18, %17 : vector<256x256xf32>
    %20 = arith.subf %16, %19 : vector<256x256xf32>
    %21 = arith.mulf %20, %20 : vector<256x256xf32>
    %22 = arith.mulf %17, %21 : vector<256x256xf32>
    %23 = math.absf %22 : vector<256x256xf32>
    %cst_13 = arith.constant dense<0.000000e+00> : vector<256xf32>
    %24 = vector.multi_reduction <add>, %23, %cst_13 [1] : vector<256x256xf32> to vector<256xf32>
    %25 = vector.shape_cast %24 : vector<256xf32> to vector<256x1xf32>
    %cst_14 = arith.constant dense<0.000000e+00> : vector<1xf32>
    %26 = vector.multi_reduction <add>, %25, %cst_14 [0] : vector<256x1xf32> to vector<1xf32>
    %27 = vector.shape_cast %26 : vector<1xf32> to vector<1x1xf32>
    %c0_15 = arith.constant 0 : index
    %c0_16 = arith.constant 0 : index
    %28 = vector.load %arg8[%c0_15, %c0_16] : memref<1x1xf32, #tpu.memory_space<vmem>>, vector<1x1xf32>
    %29 = arith.addf %28, %27 : vector<1x1xf32>
    %c0_17 = arith.constant 0 : index
    %c0_18 = arith.constant 0 : index
    %30 = vector.load %arg8[%c0_17, %c0_18] : memref<1x1xf32, #tpu.memory_space<vmem>>, vector<1x1xf32>
    tpu.vector_store %arg8[%c0_17, %c0_18], %29 {strides = array<i32>} : memref<1x1xf32, #tpu.memory_space<vmem>>, vector<1x1xf32>,
    %c1_i32 = arith.constant 1 : i32
    %31 = arith.cmpi eq, %arg1, %c1_i32 : i32
    %32 = arith.extui %31 : i1 to i32
    %c0_i32_19 = arith.constant 0 : i32
    %33 = arith.cmpi ne, %32, %c0_i32_19 : i32
    scf.if %33 {
      %c0_20 = arith.constant 0 : index
      %c0_21 = arith.constant 0 : index
      %34 = vector.load %arg8[%c0_20, %c0_21] : memref<1x1xf32, #tpu.memory_space<vmem>>, vector<1x1xf32>
      %35 = vector.shape_cast %34 : vector<1x1xf32> to vector<1x1xf32>
      %36 = vector.broadcast %35 : vector<1x1xf32> to vector<1x128xf32>
      %c0_22 = arith.constant 0 : index
      %c0_23 = arith.constant 0 : index
      %37 = vector.load %arg7[%c0_22, %c0_23] : memref<1x128xf32, #tpu.memory_space<vmem>>, vector<1x128xf32>
      tpu.vector_store %arg7[%c0_22, %c0_23], %36 {strides = array<i32>} : memref<1x128xf32, #tpu.memory_space<vmem>>, vector<1x128xf32>,
    } else {
    }
    return
  }
  func.func @transform_0(%arg0: i32, %arg1: i32) -> (i32, i32) {
    %c0_i32 = arith.constant 0 : i32
    %c0_i32_0 = arith.constant 0 : i32
    return %arg0, %c0_i32 : i32, i32
  }
  func.func @transform_1(%arg0: i32, %arg1: i32) -> (i32, i32) {
    %c0_i32 = arith.constant 0 : i32
    %c0_i32_0 = arith.constant 0 : i32
    return %arg1, %c0_i32 : i32, i32
  }
  func.func @transform_2(%arg0: i32, %arg1: i32) -> (i32, i32) {
    %c0_i32 = arith.constant 0 : i32
    %c0_i32_0 = arith.constant 0 : i32
    return %arg0, %c0_i32 : i32, i32
  }
  func.func @transform_3(%arg0: i32, %arg1: i32) -> (i32, i32) {
    %c0_i32 = arith.constant 0 : i32
    %c0_i32_0 = arith.constant 0 : i32
    return %c0_i32, %arg1 : i32, i32
  }
  func.func @transform_4(%arg0: i32, %arg1: i32) -> (i32, i32) {
    %c0_i32 = arith.constant 0 : i32
    return %arg0, %arg1 : i32, i32
  }
  func.func @transform_5(%arg0: i32, %arg1: i32) -> (i32, i32) {
    %c0_i32 = arith.constant 0 : i32
    %c0_i32_0 = arith.constant 0 : i32
    return %c0_i32, %arg0 : i32, i32
  }
}

</mosaic_0001>

<llo_original>
// kernel: tpu_custom_call.1
$region0: #{tpu_custom_call.1}
  #allocation0 [shape = 'u32[]', space=smem, size = 0x4, offset = 0x4, fixed_abs, tag = 'smem constant byte address 0x4 - core index']
  #allocation1 [shape = 'u32[144,128]{1,0:T(1,128)}', space=vmem, size = 0x12000, scoped, tag = 'internal scratch']
  #allocation2 [shape = 'f32[1,1]{1,0:T(1,128)}', space=vmem, size = 0x200, scoped, tag = 'scratch operand']
  %s0 = inlined_call_operand.vmem [shape: f32[512,32], index: 0, kind: input, shape index: {}]
  %s1 = inlined_call_operand.vmem [shape: f32[512,32], index: 1, kind: input, shape index: {}]
  %s2 = inlined_call_operand.vmem [shape: f32[512,1], index: 2, kind: input, shape index: {}]
  %s3 = inlined_call_operand.vmem [shape: f32[1,512], index: 3, kind: input, shape index: {}]
  %s4 = inlined_call_operand.hbm [shape: f32[512,512], index: 4, kind: input, shape index: {}]
  %s5 = inlined_call_operand.hbm [shape: f32[1,256], index: 5, kind: output, shape index: {}]
  %s6 = sld [smem:[#allocation0]]
  $region65: #{tpu_custom_call.1} parent=0
    _
  %s8 = ssub.s32 1, %s6
  %s9 = scalar_select 0, %s8, %s6
  $region1: #{tpu_custom_call.1} parent=0
    #allocation3 [shape = 'u8[524288]{0}', space=vmem, size = 0x80000, scoped, tag = 'input window, operand 4']
    #allocation4 [shape = 's32[2]{0}', space=sflag, size = 0x8, scoped, tag = 'scoped memory for tpu_custom_call.1']
    #allocation5 [shape = 's32[2]{0}', space=sflag, size = 0x8, scoped, tag = 'scoped memory for tpu_custom_call.1']
    #allocation6 [shape = 'u8[1024]{0}', space=vmem, size = 0x400, scoped, tag = 'output window, operand 0']
    %10 = vsyncpa [#allocation4], 0
    %s11 = scalar_lea.sflag [#allocation4], 1
    %12 = vsyncpa %s11, 0
    %13 = vsyncpa [#allocation5], 0
    %s14 = scalar_lea.sflag [#allocation5], 1
    %15 = vsyncpa %s14, 0
    loop: start=0, step=1, limit=6
    $region2: #{tpu_custom_call.1} parent=1 // loop_pre_header
      _
    $region3: #{tpu_custom_call.1} parent=1 // loop_header
      %s17 = sphi 0, %s21
      %p18 = scmp.ge.s32.totalorder %s17, 6
      %s24 = sphi 0, %s36
      %s25 = sphi 0, %s32
      %s26 = sphi 0, %s24
      %s27 = sphi 0, %s25
      %s28 = sphi 0, %s26
      %s29 = sphi 0, %s27
      %s39 = sphi 0, %s41
      %s42 = sphi 0, %s39
      %s43 = sphi 0, %s42
      %s59 = sphi 0, %s43
      %s65 = sphi 0, %s67
      %s68 = sphi 0, %s65
      %s69 = sphi 0, %s68
      %s85 = sphi 0, %s69
      %s91 = sphi 0, %s93
      %s94 = sphi 0, %s91
      %s95 = sphi 0, %s94
      %s111 = sphi 0, %s95
      %s117 = sphi 0, %s119
      %s120 = sphi 0, %s117
      %s121 = sphi 0, %s120
      %s137 = sphi 0, %s121
      %s145 = sphi 0, %s147
      %s148 = sphi 0, %s145
      %s149 = sphi 0, %s148
      %s165 = sphi 0, %s149
      %s171 = sphi 0, %s173
      %s174 = sphi 0, %s171
      %s175 = sphi 0, %s174
      %s191 = sphi 0, %s175
    $region4: #{tpu_custom_call.1} parent=1 // loop_header_branch
      %20 = sbr.rel (%p18) target = $region8
    $region5: #{tpu_custom_call.1} parent=1 // loop_body
      %s22 = ssub.s32 %s17, 1
      %s23 = ssub.s32 %s17, 2
      %s30 = sadd.s32 1, %s25
      %p31 = scmp.ge.s32.totalorder %s30, 2
      %s32 = scalar_select %p31, 0, %s30
      %s33 = sadd.s32 1, %s24
      %s34 = scalar_select %p31, %s33, %s24
      %p35 = scmp.ge.s32.totalorder %s34, 2
      %s36 = scalar_select %p35, 0, %s34
      %s37 = ssub.s32 %s24, %s36
      %p38 = scmp.eq.s32.totalorder %s37, 0
      %s40 = sadd.s32 %s39, 1
      %s41 = scalar_select %p38, %s39, %s40
      %p44 = pneg %p38
      %p45 = scmp.eq.s32.totalorder %s17, 3
      %p46 = por %p44, %p45
      %p47 = scmp.ne.s32.totalorder %s39, %s42
      %p48 = scmp.eq.s32.totalorder %s17, 0
      %p49 = por %p47, %p48
      %p50 = scmp.ne.s32.totalorder %s39, %s42
      %p51 = scmp.eq.s32.totalorder %s22, 3
      %p52 = por %p50, %p51
      %p53 = scmp.ne.s32.totalorder %s42, %s43
      %p54 = scmp.eq.s32.totalorder %s22, 0
      %p55 = por %p53, %p54
      %p56 = scmp.ne.s32.totalorder %s42, %s43
      %p57 = scmp.eq.s32.totalorder %s23, 3
      %p58 = por %p56, %p57
      %p60 = scmp.ne.s32.totalorder %s43, %s59
      %p61 = scmp.eq.s32.totalorder %s23, 0
      %p62 = por %p60, %p61
      %s63 = ssub.s32 %s25, %s32
      %p64 = scmp.eq.s32.totalorder %s63, 0
      %s66 = sadd.s32 %s65, 1
      %s67 = scalar_select %p64, %s65, %s66
      %p70 = pneg %p64
      %p71 = scmp.eq.s32.totalorder %s17, 3
      %p72 = por %p70, %p71
      %p73 = scmp.ne.s32.totalorder %s65, %s68
      %p74 = scmp.eq.s32.totalorder %s17, 0
      %p75 = por %p73, %p74
      %p76 = scmp.ne.s32.totalorder %s65, %s68
      %p77 = scmp.eq.s32.totalorder %s22, 3
      %p78 = por %p76, %p77
      %p79 = scmp.ne.s32.totalorder %s68, %s69
      %p80 = scmp.eq.s32.totalorder %s22, 0
      %p81 = por %p79, %p80
      %p82 = scmp.ne.s32.totalorder %s68, %s69
      %p83 = scmp.eq.s32.totalorder %s23, 3
      %p84 = por %p82, %p83
      %p86 = scmp.ne.s32.totalorder %s69, %s85
      %p87 = scmp.eq.s32.totalorder %s23, 0
      %p88 = por %p86, %p87
      %s89 = ssub.s32 %s24, %s36
      %p90 = scmp.eq.s32.totalorder %s89, 0
      %s92 = sadd.s32 %s91, 1
      %s93 = scalar_select %p90, %s91, %s92
      %p96 = pneg %p90
      %p97 = scmp.eq.s32.totalorder %s17, 3
      %p98 = por %p96, %p97
      %p99 = scmp.ne.s32.totalorder %s91, %s94
      %p100 = scmp.eq.s32.totalorder %s17, 0
      %p101 = por %p99, %p100
      %p102 = scmp.ne.s32.totalorder %s91, %s94
      %p103 = scmp.eq.s32.totalorder %s22, 3
      %p104 = por %p102, %p103
      %p105 = scmp.ne.s32.totalorder %s94, %s95
      %p106 = scmp.eq.s32.totalorder %s22, 0
      %p107 = por %p105, %p106
      %p108 = scmp.ne.s32.totalorder %s94, %s95
      %p109 = scmp.eq.s32.totalorder %s23, 3
      %p110 = por %p108, %p109
      %p112 = scmp.ne.s32.totalorder %s95, %s111
      %p113 = scmp.eq.s32.totalorder %s23, 0
      %p114 = por %p112, %p113
      %s115 = ssub.s32 %s25, %s32
      %p116 = scmp.eq.s32.totalorder %s115, 0
      %s118 = sadd.s32 %s117, 1
      %s119 = scalar_select %p116, %s117, %s118
      %p122 = pneg %p116
      %p123 = scmp.eq.s32.totalorder %s17, 3
      %p124 = por %p122, %p123
      %p125 = scmp.ne.s32.totalorder %s117, %s120
      %p126 = scmp.eq.s32.totalorder %s17, 0
      %p127 = por %p125, %p126
      %p128 = scmp.ne.s32.totalorder %s117, %s120
      %p129 = scmp.eq.s32.totalorder %s22, 3
      %p130 = por %p128, %p129
      %p131 = scmp.ne.s32.totalorder %s120, %s121
      %p132 = scmp.eq.s32.totalorder %s22, 0
      %p133 = por %p131, %p132
      %p134 = scmp.ne.s32.totalorder %s120, %s121
      %p135 = scmp.eq.s32.totalorder %s23, 3
      %p136 = por %p134, %p135
      %p138 = scmp.ne.s32.totalorder %s121, %s137
      %p139 = scmp.eq.s32.totalorder %s23, 0
      %p140 = por %p138, %p139
      %s141 = ssub.s32 %s24, %s36
      %s142 = ssub.s32 %s25, %s32
      %s143 = sor.u32 %s141, %s142
      %p144 = scmp.eq.s32.totalorder %s143, 0
      %s146 = sadd.s32 %s145, 1
      %s147 = scalar_select %p144, %s145, %s146
      %p150 = pneg %p144
      %p151 = scmp.eq.s32.totalorder %s17, 3
      %p152 = por %p150, %p151
      %p153 = scmp.ne.s32.totalorder %s145, %s148
      %p154 = scmp.eq.s32.totalorder %s17, 0
      %p155 = por %p153, %p154
      %p156 = scmp.ne.s32.totalorder %s145, %s148
      %p157 = scmp.eq.s32.totalorder %s22, 3
      %p158 = por %p156, %p157
      %p159 = scmp.ne.s32.totalorder %s148, %s149
      %p160 = scmp.eq.s32.totalorder %s22, 0
      %p161 = por %p159, %p160
      %p162 = scmp.ne.s32.totalorder %s148, %s149
      %p163 = scmp.eq.s32.totalorder %s23, 3
      %p164 = por %p162, %p163
      %p166 = scmp.ne.s32.totalorder %s149, %s165
      %p167 = scmp.eq.s32.totalorder %s23, 0
      %p168 = por %p166, %p167
      %s169 = ssub.s32 %s24, %s36
      %p170 = scmp.eq.s32.totalorder %s169, 0
      %s172 = sadd.s32 %s171, 1
      %s173 = scalar_select %p170, %s171, %s172
      %p176 = pneg %p170
      %p177 = scmp.eq.s32.totalorder %s17, 3
      %p178 = por %p176, %p177
      %p179 = scmp.ne.s32.totalorder %s171, %s174
      %p180 = scmp.eq.s32.totalorder %s17, 0
      %p181 = por %p179, %p180
      %p182 = scmp.ne.s32.totalorder %s171, %s174
      %p183 = scmp.eq.s32.totalorder %s22, 3
      %p184 = por %p182, %p183
      %p185 = scmp.ne.s32.totalorder %s174, %s175
      %p186 = scmp.eq.s32.totalorder %s22, 0
      %p187 = por %p185, %p186
      %p188 = scmp.ne.s32.totalorder %s174, %s175
      %p189 = scmp.eq.s32.totalorder %s23, 3
      %p190 = por %p188, %p189
      %p192 = scmp.ne.s32.totalorder %s175, %s191
      %p193 = scmp.eq.s32.totalorder %s23, 0
      %p194 = por %p192, %p193
      %p195 = scmp.le.s32.totalorder 1, %s17
      %p196 = scmp.lt.s32.totalorder %s17, 5
      %p197 = pnand %p195, %p196
      %p198 = pneg %p197
      // Predicated region
      $region9: #{tpu_custom_call.1} parent=5 // pred_check
        _
      $region10: #{tpu_custom_call.1} parent=5 // pred_check_branch
        %200 = sbr.rel (%p197) target = $region12
      $region11: #{tpu_custom_call.1} parent=5 // pred_region
        %s201 = ssub.s32 %s17, 1
      $region12: #{tpu_custom_call.1} parent=5 // pred_fallthru
        _
      %p202 = scmp.lt.s32.totalorder %s17, 4
      // Predicated region
      $region13: #{tpu_custom_call.1} parent=5 // pred_check
        %p203 = pneg %p202
      $region14: #{tpu_custom_call.1} parent=5 // pred_check_branch
        %205 = sbr.rel (%p203) target = $region16
      $region15: #{tpu_custom_call.1} parent=5 // pred_region
        // Predicated region
        $region17: #{tpu_custom_call.1} parent=15 // pred_check
          %p206 = pneg %p49
        $region18: #{tpu_custom_call.1} parent=15 // pred_check_branch
          %208 = sbr.rel (%p206) target = $region20
        $region19: #{tpu_custom_call.1} parent=15 // pred_region
          %s209 = smul.u32 32, %s24
          %p210 = scmp.lt.s32.totalorder %s209, 63
          %s211 = scalar_select %p210, %s209, 63
          %s212 = smul.addr %s211, 8
          %s213 = scalar_lea.vmem %s0, %s212
          %s214 = smul.u32 32, %s24
        $region20: #{tpu_custom_call.1} parent=15 // pred_fallthru
          _
        // Predicated region
        $region21: #{tpu_custom_call.1} parent=15 // pred_check
          %p215 = pneg %p75
        $region22: #{tpu_custom_call.1} parent=15 // pred_check_branch
          %217 = sbr.rel (%p215) target = $region24
        $region23: #{tpu_custom_call.1} parent=15 // pred_region
          %s218 = smul.u32 32, %s25
          %p219 = scmp.lt.s32.totalorder %s218, 63
          %s220 = scalar_select %p219, %s218, 63
          %s221 = smul.addr %s220, 8
          %s222 = scalar_lea.vmem %s1, %s221
          %s223 = smul.u32 32, %s25
        $region24: #{tpu_custom_call.1} parent=15 // pred_fallthru
          _
        // Predicated region
        $region25: #{tpu_custom_call.1} parent=15 // pred_check
          %p224 = pneg %p101
        $region26: #{tpu_custom_call.1} parent=15 // pred_check_branch
          %226 = sbr.rel (%p224) target = $region28
        $region27: #{tpu_custom_call.1} parent=15 // pred_region
          %s227 = smul.u32 32, %s24
          %p228 = scmp.lt.s32.totalorder %s227, 63
          %s229 = scalar_select %p228, %s227, 63
          %s230 = smul.addr %s229, 8
          %s231 = scalar_lea.vmem %s2, %s230
          %s232 = smul.u32 32, %s24
        $region28: #{tpu_custom_call.1} parent=15 // pred_fallthru
          _
        // Predicated region
        $region29: #{tpu_custom_call.1} parent=15 // pred_check
          %p233 = pneg %p127
        $region30: #{tpu_custom_call.1} parent=15 // pred_check_branch
          %235 = sbr.rel (%p233) target = $region32
        $region31: #{tpu_custom_call.1} parent=15 // pred_region
          %s236 = smul.u32 2, %s25
          %p237 = scmp.lt.s32.totalorder %s236, 3
          %s238 = scalar_select %p237, %s236, 3
          %s239 = scalar_lea.vmem %s3, %s238
          %s240 = smul.u32 2, %s25
        $region32: #{tpu_custom_call.1} parent=15 // pred_fallthru
          _
        // Predicated region
        $region33: #{tpu_custom_call.1} parent=15 // pred_check
          %p241 = pneg %p155
        $region34: #{tpu_custom_call.1} parent=15 // pred_check_branch
          %243 = sbr.rel (%p241) target = $region36
        $region35: #{tpu_custom_call.1} parent=15 // pred_region
          %s244 = sand.u32 %s145, 1
          %s245 = scalar_lea.sflag [#allocation4], %s244
          %s246 = sand.u32 %s145, 1
          %s247 = smul.addr %s246, 512
          %s248 = scalar_lea.vmem [#allocation3], %s247
          %s249 = smul.u32 32, %s24
          %s250 = smul.u32 2, %s25
          %s252 = ssub.s32 8192, 8192
          %253 = vsyncadd %s245, %s252
          %s254 = smul.addr %s249, 4
          %s255 = sadd.s32 %s250, %s254
          %s256 = smul.addr %s255, 128
          %s257 = scalar_lea.hbm %s4, %s256
          %s258 = sshll.u32 %s248, 4
          %s259 = int_to_ptr.vmem [resolvable:$true] %s258
          %264 = dma.hbm_to_vmem [thread:$0]  %s257, 8192, %s259, %s245, 512, 256, 16
        $region36: #{tpu_custom_call.1} parent=15 // pred_fallthru
          _
      $region16: #{tpu_custom_call.1} parent=5 // pred_fallthru
        _
      %p265 = scmp.le.s32.totalorder 1, %s17
      %p266 = scmp.lt.s32.totalorder %s17, 5
      %p267 = pnand %p265, %p266
      %p268 = pneg %p267
      // Predicated region
      $region37: #{tpu_custom_call.1} parent=5 // pred_check
        _
      $region38: #{tpu_custom_call.1} parent=5 // pred_check_branch
        %270 = sbr.rel (%p267) target = $region40
      $region39: #{tpu_custom_call.1} parent=5 // pred_region
        %s271 = ssub.s32 %s17, 1
        %s272 = sand.u32 %s148, 1
        %s273 = scalar_lea.sflag [#allocation4], %s272
        %s274 = sand.u32 %s148, 1
        %s275 = smul.addr %s274, 512
        %s276 = scalar_lea.vmem [#allocation3], %s275
        // Predicated region
        $region41: #{tpu_custom_call.1} parent=39 // pred_check
          %p277 = pneg %p161
        $region42: #{tpu_custom_call.1} parent=39 // pred_check_branch
          %279 = sbr.rel (%p277) target = $region44
        $region43: #{tpu_custom_call.1} parent=39 // pred_region
          %280 = dma.done %s273, 8192
        $region44: #{tpu_custom_call.1} parent=39 // pred_fallthru
          _
        %s281 = smul.u32 32, %s26
        %p282 = scmp.lt.s32.totalorder %s281, 63
        %s283 = scalar_select %p282, %s281, 63
        %s284 = smul.addr %s283, 8
        %s285 = scalar_lea.vmem %s0, %s284
        %p286 = pneg %p55
        %p287 = pneg %p52
        %s288 = smul.u32 32, %s27
        %p289 = scmp.lt.s32.totalorder %s288, 63
        %s290 = scalar_select %p289, %s288, 63
        %s291 = smul.addr %s290, 8
        %s292 = scalar_lea.vmem %s1, %s291
        %p293 = pneg %p81
        %p294 = pneg %p78
        %s295 = smul.u32 32, %s26
        %p296 = scmp.lt.s32.totalorder %s295, 63
        %s297 = scalar_select %p296, %s295, 63
        %s298 = smul.addr %s297, 8
        %s299 = scalar_lea.vmem %s2, %s298
        %p300 = pneg %p107
        %p301 = pneg %p104
        %s302 = smul.u32 2, %s27
        %p303 = scmp.lt.s32.totalorder %s302, 3
        %s304 = scalar_select %p303, %s302, 3
        %s305 = scalar_lea.vmem %s3, %s304
        %p306 = pneg %p133
        %p307 = pneg %p130
        %s308 = sand.u32 %s148, 1
        %s309 = scalar_lea.sflag [#allocation4], %s308
        %s310 = sand.u32 %s148, 1
        %s311 = smul.addr %s310, 512
        %s312 = scalar_lea.vmem [#allocation3], %s311
        %p313 = pneg %p161
        %p314 = pneg %p158
        %p315 = pneg %p187
        %p316 = pneg %p184
        %s317 = sand.u32 %s174, 1
        %s318 = scalar_lea.sflag [#allocation5], %s317
        %s319 = sand.u32 %s174, 1
        %s320 = scalar_lea.vmem [#allocation6], %s319
        %s321 = smul.u32 32, %s26
        %p322 = scmp.lt.s32.totalorder %s321, 63
        %s323 = scalar_select %p322, %s321, 63
        %s324 = smul.addr %s323, 8
        %s325 = scalar_lea.vmem %s0, %s324
        %s326 = smul.u32 32, %s26
        %s327 = smul.u32 32, %s27
        %p328 = scmp.lt.s32.totalorder %s327, 63
        %s329 = scalar_select %p328, %s327, 63
        %s330 = smul.addr %s329, 8
        %s331 = scalar_lea.vmem %s1, %s330
        %s332 = smul.u32 32, %s27
        %s333 = smul.u32 32, %s26
        %p334 = scmp.lt.s32.totalorder %s333, 63
        %s335 = scalar_select %p334, %s333, 63
        %s336 = smul.addr %s335, 8
        %s337 = scalar_lea.vmem %s2, %s336
        %s338 = smul.u32 32, %s26
        %s339 = smul.u32 2, %s27
        %p340 = scmp.lt.s32.totalorder %s339, 3
        %s341 = scalar_select %p340, %s339, 3
        %s342 = scalar_lea.vmem %s3, %s341
        %s343 = smul.u32 2, %s27
        %s344 = smul.u32 32, %s26
        %s345 = smul.u32 2, %s27
        %p346 = scmp.eq.s32.totalorder %s27, 0
        // Predicated region
        $region45: #{tpu_custom_call.1} parent=39 // pred_check
          %p347 = pneg %p346
        $region46: #{tpu_custom_call.1} parent=39 // pred_check_branch
          %349 = sbr.rel (%p347) target = $region48
        $region47: #{tpu_custom_call.1} parent=39 // pred_region
          %vm350 = vcmask 0
          %351 = vst.msk [vmem:[#allocation2] sm:$0x1] %vm350, 0.0
        $region48: #{tpu_custom_call.1} parent=39 // pred_fallthru
          _
        %v352 = vld [vmem:[%s325] sm:$0xff]
        %v353 = vld [vmem:[%s325 + $0x8] sm:$0xff]
        %v354 = vld [vmem:[%s325 + $0x10] sm:$0xff]
        %v355 = vld [vmem:[%s325 + $0x18] sm:$0xff]
        %v356 = vld [vmem:[%s325 + $0x20] sm:$0xff]
        %v357 = vld [vmem:[%s325 + $0x28] sm:$0xff]
        %v358 = vld [vmem:[%s325 + $0x30] sm:$0xff]
        %v359 = vld [vmem:[%s325 + $0x38] sm:$0xff]
        %v360 = vld [vmem:[%s325 + $0x40] sm:$0xff]
        %v361 = vld [vmem:[%s325 + $0x48] sm:$0xff]
        %v362 = vld [vmem:[%s325 + $0x50] sm:$0xff]
        %v363 = vld [vmem:[%s325 + $0x58] sm:$0xff]
        %v364 = vld [vmem:[%s325 + $0x60] sm:$0xff]
        %v365 = vld [vmem:[%s325 + $0x68] sm:$0xff]
        %v366 = vld [vmem:[%s325 + $0x70] sm:$0xff]
        %v367 = vld [vmem:[%s325 + $0x78] sm:$0xff]
        %v368 = vld [vmem:[%s325 + $0x80] sm:$0xff]
        %v369 = vld [vmem:[%s325 + $0x88] sm:$0xff]
        %v370 = vld [vmem:[%s325 + $0x90] sm:$0xff]
        %v371 = vld [vmem:[%s325 + $0x98] sm:$0xff]
        %v372 = vld [vmem:[%s325 + $0xa0] sm:$0xff]
        %v373 = vld [vmem:[%s325 + $0xa8] sm:$0xff]
        %v374 = vld [vmem:[%s325 + $0xb0] sm:$0xff]
        %v375 = vld [vmem:[%s325 + $0xb8] sm:$0xff]
        %v376 = vld [vmem:[%s325 + $0xc0] sm:$0xff]
        %v377 = vld [vmem:[%s325 + $0xc8] sm:$0xff]
        %v378 = vld [vmem:[%s325 + $0xd0] sm:$0xff]
        %v379 = vld [vmem:[%s325 + $0xd8] sm:$0xff]
        %v380 = vld [vmem:[%s325 + $0xe0] sm:$0xff]
        %v381 = vld [vmem:[%s325 + $0xe8] sm:$0xff]
        %v382 = vld [vmem:[%s325 + $0xf0] sm:$0xff]
        %v383 = vld [vmem:[%s325 + $0xf8] sm:$0xff]
        %v384 = vld [vmem:[%s331] sm:$0xff]
        %v385 = vld [vmem:[%s331 + $0x8] sm:$0xff]
        %v386 = vld [vmem:[%s331 + $0x10] sm:$0xff]
        %v387 = vld [vmem:[%s331 + $0x18] sm:$0xff]
        %v388 = vld [vmem:[%s331 + $0x20] sm:$0xff]
        %v389 = vld [vmem:[%s331 + $0x28] sm:$0xff]
        %v390 = vld [vmem:[%s331 + $0x30] sm:$0xff]
        %v391 = vld [vmem:[%s331 + $0x38] sm:$0xff]
        %v392 = vld [vmem:[%s331 + $0x40] sm:$0xff]
        %v393 = vld [vmem:[%s331 + $0x48] sm:$0xff]
        %v394 = vld [vmem:[%s331 + $0x50] sm:$0xff]
        %v395 = vld [vmem:[%s331 + $0x58] sm:$0xff]
        %v396 = vld [vmem:[%s331 + $0x60] sm:$0xff]
        %v397 = vld [vmem:[%s331 + $0x68] sm:$0xff]
        %v398 = vld [vmem:[%s331 + $0x70] sm:$0xff]
        %v399 = vld [vmem:[%s331 + $0x78] sm:$0xff]
        %v400 = vld [vmem:[%s331 + $0x80] sm:$0xff]
        %v401 = vld [vmem:[%s331 + $0x88] sm:$0xff]
        %v402 = vld [vmem:[%s331 + $0x90] sm:$0xff]
        %v403 = vld [vmem:[%s331 + $0x98] sm:$0xff]
        %v404 = vld [vmem:[%s331 + $0xa0] sm:$0xff]
        %v405 = vld [vmem:[%s331 + $0xa8] sm:$0xff]
        %v406 = vld [vmem:[%s331 + $0xb0] sm:$0xff]
        %v407 = vld [vmem:[%s331 + $0xb8] sm:$0xff]
        %v408 = vld [vmem:[%s331 + $0xc0] sm:$0xff]
        %v409 = vld [vmem:[%s331 + $0xc8] sm:$0xff]
        %v410 = vld [vmem:[%s331 + $0xd0] sm:$0xff]
        %v411 = vld [vmem:[%s331 + $0xd8] sm:$0xff]
        %v412 = vld [vmem:[%s331 + $0xe0] sm:$0xff]
        %v413 = vld [vmem:[%s331 + $0xe8] sm:$0xff]
        %v414 = vld [vmem:[%s331 + $0xf0] sm:$0xff]
        %v415 = vld [vmem:[%s331 + $0xf8] sm:$0xff]
        %vm416 = vcmask 261120
        %v418 = vsel %vm416, %v352, 0
        %v421 = vsel %vm416, %v353, 0
        %v424 = vsel %vm416, %v354, 0
        %v427 = vsel %vm416, %v355, 0
        %v430 = vsel %vm416, %v356, 0
        %v433 = vsel %vm416, %v357, 0
        %v436 = vsel %vm416, %v358, 0
        %v439 = vsel %vm416, %v359, 0
        %v442 = vsel %vm416, %v360, 0
        %v445 = vsel %vm416, %v361, 0
        %v448 = vsel %vm416, %v362, 0
        %v451 = vsel %vm416, %v363, 0
        %v454 = vsel %vm416, %v364, 0
        %v457 = vsel %vm416, %v365, 0
        %v460 = vsel %vm416, %v366, 0
        %v463 = vsel %vm416, %v367, 0
        %v466 = vsel %vm416, %v368, 0
        %v469 = vsel %vm416, %v369, 0
        %v472 = vsel %vm416, %v370, 0
        %v475 = vsel %vm416, %v371, 0
        %v478 = vsel %vm416, %v372, 0
        %v481 = vsel %vm416, %v373, 0
        %v484 = vsel %vm416, %v374, 0
        %v487 = vsel %vm416, %v375, 0
        %v490 = vsel %vm416, %v376, 0
        %v493 = vsel %vm416, %v377, 0
        %v496 = vsel %vm416, %v378, 0
        %v499 = vsel %vm416, %v379, 0
        %v502 = vsel %vm416, %v380, 0
        %v505 = vsel %vm416, %v381, 0
        %v508 = vsel %vm416, %v382, 0
        %v511 = vsel %vm416, %v383, 0
        %v514 = vsel %vm416, %v384, 0
        %v517 = vsel %vm416, %v385, 0
        %v520 = vsel %vm416, %v386, 0
        %v523 = vsel %vm416, %v387, 0
        %v526 = vsel %vm416, %v388, 0
        %v529 = vsel %vm416, %v389, 0
        %v532 = vsel %vm416, %v390, 0
        %v535 = vsel %vm416, %v391, 0
        %v538 = vsel %vm416, %v392, 0
        %v541 = vsel %vm416, %v393, 0
        %v544 = vsel %vm416, %v394, 0
        %v547 = vsel %vm416, %v395, 0
        %v550 = vsel %vm416, %v396, 0
        %v553 = vsel %vm416, %v397, 0
        %v556 = vsel %vm416, %v398, 0
        %v559 = vsel %vm416, %v399, 0
        %v562 = vsel %vm416, %v400, 0
        %v565 = vsel %vm416, %v401, 0
        %v568 = vsel %vm416, %v402, 0
        %v571 = vsel %vm416, %v403, 0
        %v574 = vsel %vm416, %v404, 0
        %v577 = vsel %vm416, %v405, 0
        %v580 = vsel %vm416, %v406, 0
        %v583 = vsel %vm416, %v407, 0
        %v586 = vsel %vm416, %v408, 0
        %v589 = vsel %vm416, %v409, 0
        %v592 = vsel %vm416, %v410, 0
        %v595 = vsel %vm416, %v411, 0
        %v598 = vsel %vm416, %v412, 0
        %v601 = vsel %vm416, %v413, 0
        %v604 = vsel %vm416, %v414, 0
        %v607 = vsel %vm416, %v415, 0
        %609 = vmatprep.subr.mxu0 0.0
        %610 = vmatpush1.xpose.msra.mxu0 %v514
        %611 = vmatprep.subr.mxu0 0.0
        %612 = vmatpush1.xpose.msra.mxu0 %v517
        %613 = vmatprep.subr.mxu0 0.0
        %614 = vmatpush1.xpose.msra.mxu0 %v520
        %615 = vmatprep.subr.mxu0 0.0
        %616 = vmatpush1.xpose.msra.mxu0 %v523
        %617 = vmatprep.subr.mxu0 0.0
        %618 = vmatpush1.xpose.msra.mxu0 %v526
        %619 = vmatprep.subr.mxu0 0.0
        %620 = vmatpush1.xpose.msra.mxu0 %v529
        %621 = vmatprep.subr.mxu0 0.0
        %622 = vmatpush1.xpose.msra.mxu0 %v532
        %623 = vmatprep.subr.mxu0 0.0
        %624 = vmatpush1.xpose.msra.mxu0 %v535
        %625 = vmatprep.subr.mxu0 0.0
        %626 = vmatpush1.xpose.msra.mxu0 %v538
        %627 = vmatprep.subr.mxu0 0.0
        %628 = vmatpush1.xpose.msra.mxu0 %v541
        %629 = vmatprep.subr.mxu0 0.0
        %630 = vmatpush1.xpose.msra.mxu0 %v544
        %631 = vmatprep.subr.mxu0 0.0
        %632 = vmatpush1.xpose.msra.mxu0 %v547
        %633 = vmatprep.subr.mxu0 0.0
        %634 = vmatpush1.xpose.msra.mxu0 %v550
        %635 = vmatprep.subr.mxu0 0.0
        %636 = vmatpush1.xpose.msra.mxu0 %v553
        %637 = vmatprep.subr.mxu0 0.0
        %638 = vmatpush1.xpose.msra.mxu0 %v556
        %639 = vmatprep.subr.mxu0 0.0
        %640 = vmatpush1.xpose.msra.mxu0 %v559
        %641 = vmatprep.subr.mxu0 0.0
        %642 = vmatpush1.xpose.msra.mxu0 %v562
        %643 = vmatprep.subr.mxu0 0.0
        %644 = vmatpush1.xpose.msra.mxu0 %v565
        %645 = vmatprep.subr.mxu0 0.0
        %646 = vmatpush1.xpose.msra.mxu0 %v568
        %647 = vmatprep.subr.mxu0 0.0
        %648 = vmatpush1.xpose.msra.mxu0 %v571
        %649 = vmatprep.subr.mxu0 0.0
        %650 = vmatpush1.xpose.msra.mxu0 %v574
        %651 = vmatprep.subr.mxu0 0.0
        %652 = vmatpush1.xpose.msra.mxu0 %v577
        %653 = vmatprep.subr.mxu0 0.0
        %654 = vmatpush1.xpose.msra.mxu0 %v580
        %655 = vmatprep.subr.mxu0 0.0
        %656 = vmatpush1.xpose.msra.mxu0 %v583
        %657 = vmatprep.subr.mxu0 0.0
        %658 = vmatpush1.xpose.msra.mxu0 %v586
        %659 = vmatprep.subr.mxu0 0.0
        %660 = vmatpush1.xpose.msra.mxu0 %v589
        %661 = vmatprep.subr.mxu0 0.0
        %662 = vmatpush1.xpose.msra.mxu0 %v592
        %663 = vmatprep.subr.mxu0 0.0
        %664 = vmatpush1.xpose.msra.mxu0 %v595
        %665 = vmatprep.subr.mxu0 0.0
        %666 = vmatpush1.xpose.msra.mxu0 %v598
        %667 = vmatprep.subr.mxu0 0.0
        %668 = vmatpush1.xpose.msra.mxu0 %v601
        %669 = vmatprep.subr.mxu0 0.0
        %670 = vmatpush1.xpose.msra.mxu0 %v604
        %671 = vmatprep.subr.mxu0 0.0
        %672 = vmatpush1.xpose.msra.mxu0 %v607
        %673 = vmatprep.mubr.f32.mxu0 0.0
        %674 = vmatmul.mubr.f32.gmra.mrb[0].mxu0 %v418
        %v675 = vpop.f32.mrb[0].mxu0
        %v676 = vadd.f32 0.0, %v675
        %v677 = vpop.f32.mrb[0].mxu0
        %v678 = vadd.f32 0.0, %v677
        %679 = vmatprep.mubr.f32.mxu0 0.0
        %680 = vmatmul.mubr.f32.gmra.mrb[0].mxu0 %v421
        %v681 = vpop.f32.mrb[0].mxu0
        %v682 = vadd.f32 0.0, %v681
        %v683 = vpop.f32.mrb[0].mxu0
        %v684 = vadd.f32 0.0, %v683
        %685 = vmatprep.mubr.f32.mxu0 0.0
        %686 = vmatmul.mubr.f32.gmra.mrb[0].mxu0 %v424
        %v687 = vpop.f32.mrb[0].mxu0
        %v688 = vadd.f32 0.0, %v687
        %v689 = vpop.f32.mrb[0].mxu0
        %v690 = vadd.f32 0.0, %v689
        %691 = vmatprep.mubr.f32.mxu0 0.0
        %692 = vmatmul.mubr.f32.gmra.mrb[0].mxu0 %v427
        %v693 = vpop.f32.mrb[0].mxu0
        %v694 = vadd.f32 0.0, %v693
        %v695 = vpop.f32.mrb[0].mxu0
        %v696 = vadd.f32 0.0, %v695
        %697 = vmatprep.mubr.f32.mxu0 0.0
        %698 = vmatmul.mubr.f32.gmra.mrb[0].mxu0 %v430
        %v699 = vpop.f32.mrb[0].mxu0
        %v700 = vadd.f32 0.0, %v699
        %v701 = vpop.f32.mrb[0].mxu0
        %v702 = vadd.f32 0.0, %v701
        %703 = vmatprep.mubr.f32.mxu0 0.0
        %704 = vmatmul.mubr.f32.gmra.mrb[0].mxu0 %v433
        %v705 = vpop.f32.mrb[0].mxu0
        %v706 = vadd.f32 0.0, %v705
        %v707 = vpop.f32.mrb[0].mxu0
        %v708 = vadd.f32 0.0, %v707
        %709 = vmatprep.mubr.f32.mxu0 0.0
        %710 = vmatmul.mubr.f32.gmra.mrb[0].mxu0 %v436
        %v711 = vpop.f32.mrb[0].mxu0
        %v712 = vadd.f32 0.0, %v711
        %v713 = vpop.f32.mrb[0].mxu0
        %v714 = vadd.f32 0.0, %v713
        %715 = vmatprep.mubr.f32.mxu0 0.0
        %716 = vmatmul.mubr.f32.gmra.mrb[0].mxu0 %v439
        %v717 = vpop.f32.mrb[0].mxu0
        %v718 = vadd.f32 0.0, %v717
        %v719 = vpop.f32.mrb[0].mxu0
        %v720 = vadd.f32 0.0, %v719
        %721 = vmatprep.mubr.f32.mxu0 0.0
        %722 = vmatmul.mubr.f32.gmra.mrb[0].mxu0 %v442
        %v723 = vpop.f32.mrb[0].mxu0
        %v724 = vadd.f32 0.0, %v723
        %v725 = vpop.f32.mrb[0].mxu0
        %v726 = vadd.f32 0.0, %v725
        %727 = vmatprep.mubr.f32.mxu0 0.0
        %728 = vmatmul.mubr.f32.gmra.mrb[0].mxu0 %v445
        %v729 = vpop.f32.mrb[0].mxu0
        %v730 = vadd.f32 0.0, %v729
        %v731 = vpop.f32.mrb[0].mxu0
        %v732 = vadd.f32 0.0, %v731
        %733 = vmatprep.mubr.f32.mxu0 0.0
        %734 = vmatmul.mubr.f32.gmra.mrb[0].mxu0 %v448
        %v735 = vpop.f32.mrb[0].mxu0
        %v736 = vadd.f32 0.0, %v735
        %v737 = vpop.f32.mrb[0].mxu0
        %v738 = vadd.f32 0.0, %v737
        %739 = vmatprep.mubr.f32.mxu0 0.0
        %740 = vmatmul.mubr.f32.gmra.mrb[0].mxu0 %v451
        %v741 = vpop.f32.mrb[0].mxu0
        %v742 = vadd.f32 0.0, %v741
        %v743 = vpop.f32.mrb[0].mxu0
        %v744 = vadd.f32 0.0, %v743
        %745 = vmatprep.mubr.f32.mxu0 0.0
        %746 = vmatmul.mubr.f32.gmra.mrb[0].mxu0 %v454
        %v747 = vpop.f32.mrb[0].mxu0
        %v748 = vadd.f32 0.0, %v747
        %v749 = vpop.f32.mrb[0].mxu0
        %v750 = vadd.f32 0.0, %v749
        %751 = vmatprep.mubr.f32.mxu0 0.0
        %752 = vmatmul.mubr.f32.gmra.mrb[0].mxu0 %v457
        %v753 = vpop.f32.mrb[0].mxu0
        %v754 = vadd.f32 0.0, %v753
        %v755 = vpop.f32.mrb[0].mxu0
        %v756 = vadd.f32 0.0, %v755
        %757 = vmatprep.mubr.f32.mxu0 0.0
        %758 = vmatmul.mubr.f32.gmra.mrb[0].mxu0 %v460
        %v759 = vpop.f32.mrb[0].mxu0
        %v760 = vadd.f32 0.0, %v759
        %v761 = vpop.f32.mrb[0].mxu0
        %v762 = vadd.f32 0.0, %v761
        %763 = vmatprep.mubr.f32.mxu0 0.0
        %764 = vmatmul.mubr.f32.gmra.mrb[0].mxu0 %v463
        %v765 = vpop.f32.mrb[0].mxu0
        %v766 = vadd.f32 0.0, %v765
        %v767 = vpop.f32.mrb[0].mxu0
        %v768 = vadd.f32 0.0, %v767
        %769 = vmatprep.mubr.f32.mxu0 0.0
        %770 = vmatmul.mubr.f32.gmra.mrb[0].mxu0 %v466
        %v771 = vpop.f32.mrb[0].mxu0
        %v772 = vadd.f32 0.0, %v771
        %v773 = vpop.f32.mrb[0].mxu0
        %v774 = vadd.f32 0.0, %v773
        %775 = vmatprep.mubr.f32.mxu0 0.0
        %776 = vmatmul.mubr.f32.gmra.mrb[0].mxu0 %v469
        %v777 = vpop.f32.mrb[0].mxu0
        %v778 = vadd.f32 0.0, %v777
        %v779 = vpop.f32.mrb[0].mxu0
        %v780 = vadd.f32 0.0, %v779
        %781 = vmatprep.mubr.f32.mxu0 0.0
        %782 = vmatmul.mubr.f32.gmra.mrb[0].mxu0 %v472
        %v783 = vpop.f32.mrb[0].mxu0
        %v784 = vadd.f32 0.0, %v783
        %v785 = vpop.f32.mrb[0].mxu0
        %v786 = vadd.f32 0.0, %v785
        %787 = vmatprep.mubr.f32.mxu0 0.0
        %788 = vmatmul.mubr.f32.gmra.mrb[0].mxu0 %v475
        %v789 = vpop.f32.mrb[0].mxu0
        %v790 = vadd.f32 0.0, %v789
        %v791 = vpop.f32.mrb[0].mxu0
        %v792 = vadd.f32 0.0, %v791
        %793 = vmatprep.mubr.f32.mxu0 0.0
        %794 = vmatmul.mubr.f32.gmra.mrb[0].mxu0 %v478
        %v795 = vpop.f32.mrb[0].mxu0
        %v796 = vadd.f32 0.0, %v795
        %v797 = vpop.f32.mrb[0].mxu0
        %v798 = vadd.f32 0.0, %v797
        %799 = vmatprep.mubr.f32.mxu0 0.0
        %800 = vmatmul.mubr.f32.gmra.mrb[0].mxu0 %v481
        %v801 = vpop.f32.mrb[0].mxu0
        %v802 = vadd.f32 0.0, %v801
        %v803 = vpop.f32.mrb[0].mxu0
        %v804 = vadd.f32 0.0, %v803
        %805 = vmatprep.mubr.f32.mxu0 0.0
        %806 = vmatmul.mubr.f32.gmra.mrb[0].mxu0 %v484
        %v807 = vpop.f32.mrb[0].mxu0
        %v808 = vadd.f32 0.0, %v807
        %v809 = vpop.f32.mrb[0].mxu0
        %v810 = vadd.f32 0.0, %v809
        %811 = vmatprep.mubr.f32.mxu0 0.0
        %812 = vmatmul.mubr.f32.gmra.mrb[0].mxu0 %v487
        %v813 = vpop.f32.mrb[0].mxu0
        %v814 = vadd.f32 0.0, %v813
        %v815 = vpop.f32.mrb[0].mxu0
        %v816 = vadd.f32 0.0, %v815
        %817 = vmatprep.mubr.f32.mxu0 0.0
        %818 = vmatmul.mubr.f32.gmra.mrb[0].mxu0 %v490
        %v819 = vpop.f32.mrb[0].mxu0
        %v820 = vadd.f32 0.0, %v819
        %v821 = vpop.f32.mrb[0].mxu0
        %v822 = vadd.f32 0.0, %v821
        %823 = vmatprep.mubr.f32.mxu0 0.0
        %824 = vmatmul.mubr.f32.gmra.mrb[0].mxu0 %v493
        %v825 = vpop.f32.mrb[0].mxu0
        %v826 = vadd.f32 0.0, %v825
        %v827 = vpop.f32.mrb[0].mxu0
        %v828 = vadd.f32 0.0, %v827
        %829 = vmatprep.mubr.f32.mxu0 0.0
        %830 = vmatmul.mubr.f32.gmra.mrb[0].mxu0 %v496
        %v831 = vpop.f32.mrb[0].mxu0
        %v832 = vadd.f32 0.0, %v831
        %v833 = vpop.f32.mrb[0].mxu0
        %v834 = vadd.f32 0.0, %v833
        %835 = vmatprep.mubr.f32.mxu0 0.0
        %836 = vmatmul.mubr.f32.gmra.mrb[0].mxu0 %v499
        %v837 = vpop.f32.mrb[0].mxu0
        %v838 = vadd.f32 0.0, %v837
        %v839 = vpop.f32.mrb[0].mxu0
        %v840 = vadd.f32 0.0, %v839
        %841 = vmatprep.mubr.f32.mxu0 0.0
        %842 = vmatmul.mubr.f32.gmra.mrb[0].mxu0 %v502
        %v843 = vpop.f32.mrb[0].mxu0
        %v844 = vadd.f32 0.0, %v843
        %v845 = vpop.f32.mrb[0].mxu0
        %v846 = vadd.f32 0.0, %v845
        %847 = vmatprep.mubr.f32.mxu0 0.0
        %848 = vmatmul.mubr.f32.gmra.mrb[0].mxu0 %v505
        %v849 = vpop.f32.mrb[0].mxu0
        %v850 = vadd.f32 0.0, %v849
        %v851 = vpop.f32.mrb[0].mxu0
        %v852 = vadd.f32 0.0, %v851
        %853 = vmatprep.mubr.f32.mxu0 0.0
        %854 = vmatmul.mubr.f32.gmra.mrb[0].mxu0 %v508
        %v855 = vpop.f32.mrb[0].mxu0
        %v856 = vadd.f32 0.0, %v855
        %v857 = vpop.f32.mrb[0].mxu0
        %v858 = vadd.f32 0.0, %v857
        %859 = vmatprep.mubr.f32.mxu0 0.0
        %860 = vmatmul.mubr.f32.gmra.mrb[0].mxu0 %v511
        %v861 = vpop.f32.mrb[0].mxu0
        %v862 = vadd.f32 0.0, %v861
        %v863 = vpop.f32.mrb[0].mxu0
        %v864 = vadd.f32 0.0, %v863
        %865 = vdwg.mxu0
        %v866 = vld [vmem:[%s337] sm:$0xff]
        %v867 = vld [vmem:[%s337 + $0x8] sm:$0xff]
        %v868 = vld [vmem:[%s337 + $0x10] sm:$0xff]
        %v869 = vld [vmem:[%s337 + $0x18] sm:$0xff]
        %v870 = vld [vmem:[%s337 + $0x20] sm:$0xff]
        %v871 = vld [vmem:[%s337 + $0x28] sm:$0xff]
        %v872 = vld [vmem:[%s337 + $0x30] sm:$0xff]
        %v873 = vld [vmem:[%s337 + $0x38] sm:$0xff]
        %v874 = vld [vmem:[%s337 + $0x40] sm:$0xff]
        %v875 = vld [vmem:[%s337 + $0x48] sm:$0xff]
        %v876 = vld [vmem:[%s337 + $0x50] sm:$0xff]
        %v877 = vld [vmem:[%s337 + $0x58] sm:$0xff]
        %v878 = vld [vmem:[%s337 + $0x60] sm:$0xff]
        %v879 = vld [vmem:[%s337 + $0x68] sm:$0xff]
        %v880 = vld [vmem:[%s337 + $0x70] sm:$0xff]
        %v881 = vld [vmem:[%s337 + $0x78] sm:$0xff]
        %v882 = vld [vmem:[%s337 + $0x80] sm:$0xff]
        %v883 = vld [vmem:[%s337 + $0x88] sm:$0xff]
        %v884 = vld [vmem:[%s337 + $0x90] sm:$0xff]
        %v885 = vld [vmem:[%s337 + $0x98] sm:$0xff]
        %v886 = vld [vmem:[%s337 + $0xa0] sm:$0xff]
        %v887 = vld [vmem:[%s337 + $0xa8] sm:$0xff]
        %v888 = vld [vmem:[%s337 + $0xb0] sm:$0xff]
        %v889 = vld [vmem:[%s337 + $0xb8] sm:$0xff]
        %v890 = vld [vmem:[%s337 + $0xc0] sm:$0xff]
        %v891 = vld [vmem:[%s337 + $0xc8] sm:$0xff]
        %v892 = vld [vmem:[%s337 + $0xd0] sm:$0xff]
        %v893 = vld [vmem:[%s337 + $0xd8] sm:$0xff]
        %v894 = vld [vmem:[%s337 + $0xe0] sm:$0xff]
        %v895 = vld [vmem:[%s337 + $0xe8] sm:$0xff]
        %v896 = vld [vmem:[%s337 + $0xf0] sm:$0xff]
        %v897 = vld [vmem:[%s337 + $0xf8] sm:$0xff]
        %v898 = vld [vmem:[%s342] sm:$0x3]
        %900 = vset.pattern.permute.xlu0 0
        %901 = vperm.xlu0 %900, %v866
        %v902 = vpop.permute.xlu0 %901
        %905 = vset.pattern.permute.xlu0 0
        %906 = vperm.xlu0 %905, %v867
        %v907 = vpop.permute.xlu0 %906
        %910 = vset.pattern.permute.xlu0 0
        %911 = vperm.xlu0 %910, %v868
        %v912 = vpop.permute.xlu0 %911
        %915 = vset.pattern.permute.xlu0 0
        %916 = vperm.xlu0 %915, %v869
        %v917 = vpop.permute.xlu0 %916
        %920 = vset.pattern.permute.xlu0 0
        %921 = vperm.xlu0 %920, %v870
        %v922 = vpop.permute.xlu0 %921
        %925 = vset.pattern.permute.xlu0 0
        %926 = vperm.xlu0 %925, %v871
        %v927 = vpop.permute.xlu0 %926
        %930 = vset.pattern.permute.xlu0 0
        %931 = vperm.xlu0 %930, %v872
        %v932 = vpop.permute.xlu0 %931
        %935 = vset.pattern.permute.xlu0 0
        %936 = vperm.xlu0 %935, %v873
        %v937 = vpop.permute.xlu0 %936
        %940 = vset.pattern.permute.xlu0 0
        %941 = vperm.xlu0 %940, %v874
        %v942 = vpop.permute.xlu0 %941
        %945 = vset.pattern.permute.xlu0 0
        %946 = vperm.xlu0 %945, %v875
        %v947 = vpop.permute.xlu0 %946
        %950 = vset.pattern.permute.xlu0 0
        %951 = vperm.xlu0 %950, %v876
        %v952 = vpop.permute.xlu0 %951
        %955 = vset.pattern.permute.xlu0 0
        %956 = vperm.xlu0 %955, %v877
        %v957 = vpop.permute.xlu0 %956
        %960 = vset.pattern.permute.xlu0 0
        %961 = vperm.xlu0 %960, %v878
        %v962 = vpop.permute.xlu0 %961
        %965 = vset.pattern.permute.xlu0 0
        %966 = vperm.xlu0 %965, %v879
        %v967 = vpop.permute.xlu0 %966
        %970 = vset.pattern.permute.xlu0 0
        %971 = vperm.xlu0 %970, %v880
        %v972 = vpop.permute.xlu0 %971
        %975 = vset.pattern.permute.xlu0 0
        %976 = vperm.xlu0 %975, %v881
        %v977 = vpop.permute.xlu0 %976
        %980 = vset.pattern.permute.xlu0 0
        %981 = vperm.xlu0 %980, %v882
        %v982 = vpop.permute.xlu0 %981
        %985 = vset.pattern.permute.xlu0 0
        %986 = vperm.xlu0 %985, %v883
        %v987 = vpop.permute.xlu0 %986
        %990 = vset.pattern.permute.xlu0 0
        %991 = vperm.xlu0 %990, %v884
        %v992 = vpop.permute.xlu0 %991
        %995 = vset.pattern.permute.xlu0 0
        %996 = vperm.xlu0 %995, %v885
        %v997 = vpop.permute.xlu0 %996
        %1000 = vset.pattern.permute.xlu0 0
        %1001 = vperm.xlu0 %1000, %v886
        %v1002 = vpop.permute.xlu0 %1001
        %1005 = vset.pattern.permute.xlu0 0
        %1006 = vperm.xlu0 %1005, %v887
        %v1007 = vpop.permute.xlu0 %1006
        %1010 = vset.pattern.permute.xlu0 0
        %1011 = vperm.xlu0 %1010, %v888
        %v1012 = vpop.permute.xlu0 %1011
        %1015 = vset.pattern.permute.xlu0 0
        %1016 = vperm.xlu0 %1015, %v889
        %v1017 = vpop.permute.xlu0 %1016
        %1020 = vset.pattern.permute.xlu0 0
        %1021 = vperm.xlu0 %1020, %v890
        %v1022 = vpop.permute.xlu0 %1021
        %1025 = vset.pattern.permute.xlu0 0
        %1026 = vperm.xlu0 %1025, %v891
        %v1027 = vpop.permute.xlu0 %1026
        %1030 = vset.pattern.permute.xlu0 0
        %1031 = vperm.xlu0 %1030, %v892
        %v1032 = vpop.permute.xlu0 %1031
        %1035 = vset.pattern.permute.xlu0 0
        %1036 = vperm.xlu0 %1035, %v893
        %v1037 = vpop.permute.xlu0 %1036
        %1040 = vset.pattern.permute.xlu0 0
        %1041 = vperm.xlu0 %1040, %v894
        %v1042 = vpop.permute.xlu0 %1041
        %1045 = vset.pattern.permute.xlu0 0
        %1046 = vperm.xlu0 %1045, %v895
        %v1047 = vpop.permute.xlu0 %1046
        %1050 = vset.pattern.permute.xlu0 0
        %1051 = vperm.xlu0 %1050, %v896
        %v1052 = vpop.permute.xlu0 %1051
        %1055 = vset.pattern.permute.xlu0 0
        %1056 = vperm.xlu0 %1055, %v897
        %v1057 = vpop.permute.xlu0 %1056
        %v1060 = vlaneseq
        %v1061 = vshrl.u32 %v1060, 7
        %v1062 = vsub.s32 0, %v1061
        %v1063 = vrot.slane %v898, %v1062
        %v1064 = vlaneseq
        %v1065 = vshrl.u32 %v1064, 7
        %v1066 = vsub.s32 1, %v1065
        %v1067 = vrot.slane %v898, %v1066
        %v1070 = vadd.f32 %v902, %v1063
        %v1071 = vadd.f32 %v902, %v1067
        %v1072 = vadd.f32 %v907, %v1063
        %v1073 = vadd.f32 %v907, %v1067
        %v1074 = vadd.f32 %v912, %v1063
        %v1075 = vadd.f32 %v912, %v1067
        %v1076 = vadd.f32 %v917, %v1063
        %v1077 = vadd.f32 %v917, %v1067
        %v1078 = vadd.f32 %v922, %v1063
        %v1079 = vadd.f32 %v922, %v1067
        %v1080 = vadd.f32 %v927, %v1063
        %v1081 = vadd.f32 %v927, %v1067
        %v1082 = vadd.f32 %v932, %v1063
        %v1083 = vadd.f32 %v932, %v1067
        %v1084 = vadd.f32 %v937, %v1063
        %v1085 = vadd.f32 %v937, %v1067
        %v1086 = vadd.f32 %v942, %v1063
        %v1087 = vadd.f32 %v942, %v1067
        %v1088 = vadd.f32 %v947, %v1063
        %v1089 = vadd.f32 %v947, %v1067
        %v1090 = vadd.f32 %v952, %v1063
        %v1091 = vadd.f32 %v952, %v1067
        %v1092 = vadd.f32 %v957, %v1063
        %v1093 = vadd.f32 %v957, %v1067
        %v1094 = vadd.f32 %v962, %v1063
        %v1095 = vadd.f32 %v962, %v1067
        %v1096 = vadd.f32 %v967, %v1063
        %v1097 = vadd.f32 %v967, %v1067
        %v1098 = vadd.f32 %v972, %v1063
        %v1099 = vadd.f32 %v972, %v1067
        %v1100 = vadd.f32 %v977, %v1063
        %v1101 = vadd.f32 %v977, %v1067
        %v1102 = vadd.f32 %v982, %v1063
        %v1103 = vadd.f32 %v982, %v1067
        %v1104 = vadd.f32 %v987, %v1063
        %v1105 = vadd.f32 %v987, %v1067
        %v1106 = vadd.f32 %v992, %v1063
        %v1107 = vadd.f32 %v992, %v1067
        %v1108 = vadd.f32 %v997, %v1063
        %v1109 = vadd.f32 %v997, %v1067
        %v1110 = vadd.f32 %v1002, %v1063
        %v1111 = vadd.f32 %v1002, %v1067
        %v1112 = vadd.f32 %v1007, %v1063
        %v1113 = vadd.f32 %v1007, %v1067
        %v1114 = vadd.f32 %v1012, %v1063
        %v1115 = vadd.f32 %v1012, %v1067
        %v1116 = vadd.f32 %v1017, %v1063
        %v1117 = vadd.f32 %v1017, %v1067
        %v1118 = vadd.f32 %v1022, %v1063
        %v1119 = vadd.f32 %v1022, %v1067
        %v1120 = vadd.f32 %v1027, %v1063
        %v1121 = vadd.f32 %v1027, %v1067
        %v1122 = vadd.f32 %v1032, %v1063
        %v1123 = vadd.f32 %v1032, %v1067
        %v1124 = vadd.f32 %v1037, %v1063
        %v1125 = vadd.f32 %v1037, %v1067
        %v1126 = vadd.f32 %v1042, %v1063
        %v1127 = vadd.f32 %v1042, %v1067
        %v1128 = vadd.f32 %v1047, %v1063
        %v1129 = vadd.f32 %v1047, %v1067
        %v1130 = vadd.f32 %v1052, %v1063
        %v1131 = vadd.f32 %v1052, %v1067
        %v1132 = vadd.f32 %v1057, %v1063
        %v1133 = vadd.f32 %v1057, %v1067
        %v1134 = vmul.f32 %v676, 2.0
        %v1135 = vmul.f32 %v678, 2.0
        %v1136 = vmul.f32 %v682, 2.0
        %v1137 = vmul.f32 %v684, 2.0
        %v1138 = vmul.f32 %v688, 2.0
        %v1139 = vmul.f32 %v690, 2.0
        %v1140 = vmul.f32 %v694, 2.0
        %v1141 = vmul.f32 %v696, 2.0
        %v1142 = vmul.f32 %v700, 2.0
        %v1143 = vmul.f32 %v702, 2.0
        %v1144 = vmul.f32 %v706, 2.0
        %v1145 = vmul.f32 %v708, 2.0
        %v1146 = vmul.f32 %v712, 2.0
        %v1147 = vmul.f32 %v714, 2.0
        %v1148 = vmul.f32 %v718, 2.0
        %v1149 = vmul.f32 %v720, 2.0
        %v1150 = vmul.f32 %v724, 2.0
        %v1151 = vmul.f32 %v726, 2.0
        %v1152 = vmul.f32 %v730, 2.0
        %v1153 = vmul.f32 %v732, 2.0
        %v1154 = vmul.f32 %v736, 2.0
        %v1155 = vmul.f32 %v738, 2.0
        %v1156 = vmul.f32 %v742, 2.0
        %v1157 = vmul.f32 %v744, 2.0
        %v1158 = vmul.f32 %v748, 2.0
        %v1159 = vmul.f32 %v750, 2.0
        %v1160 = vmul.f32 %v754, 2.0
        %v1161 = vmul.f32 %v756, 2.0
        %v1162 = vmul.f32 %v760, 2.0
        %v1163 = vmul.f32 %v762, 2.0
        %v1164 = vmul.f32 %v766, 2.0
        %v1165 = vmul.f32 %v768, 2.0
        %v1166 = vmul.f32 %v772, 2.0
        %v1167 = vmul.f32 %v774, 2.0
        %v1168 = vmul.f32 %v778, 2.0
        %v1169 = vmul.f32 %v780, 2.0
        %v1170 = vmul.f32 %v784, 2.0
        %v1171 = vmul.f32 %v786, 2.0
        %v1172 = vmul.f32 %v790, 2.0
        %v1173 = vmul.f32 %v792, 2.0
        %v1174 = vmul.f32 %v796, 2.0
        %v1175 = vmul.f32 %v798, 2.0
        %v1176 = vmul.f32 %v802, 2.0
        %v1177 = vmul.f32 %v804, 2.0
        %v1178 = vmul.f32 %v808, 2.0
        %v1179 = vmul.f32 %v810, 2.0
        %v1180 = vmul.f32 %v814, 2.0
        %v1181 = vmul.f32 %v816, 2.0
        %v1182 = vmul.f32 %v820, 2.0
        %v1183 = vmul.f32 %v822, 2.0
        %v1184 = vmul.f32 %v826, 2.0
        %v1185 = vmul.f32 %v828, 2.0
        %v1186 = vmul.f32 %v832, 2.0
        %v1187 = vmul.f32 %v834, 2.0
        %v1188 = vmul.f32 %v838, 2.0
        %v1189 = vmul.f32 %v840, 2.0
        %v1190 = vmul.f32 %v844, 2.0
        %v1191 = vmul.f32 %v846, 2.0
        %v1192 = vmul.f32 %v850, 2.0
        %v1193 = vmul.f32 %v852, 2.0
        %v1194 = vmul.f32 %v856, 2.0
        %v1195 = vmul.f32 %v858, 2.0
        %v1196 = vmul.f32 %v862, 2.0
        %v1197 = vmul.f32 %v864, 2.0
        %v1198 = vsub.f32 %v1070, %v1134
        %v1199 = vsub.f32 %v1071, %v1135
        %v1200 = vsub.f32 %v1072, %v1136
        %v1201 = vsub.f32 %v1073, %v1137
        %v1202 = vsub.f32 %v1074, %v1138
        %v1203 = vsub.f32 %v1075, %v1139
        %v1204 = vsub.f32 %v1076, %v1140
        %v1205 = vsub.f32 %v1077, %v1141
        %v1206 = vsub.f32 %v1078, %v1142
        %v1207 = vsub.f32 %v1079, %v1143
        %v1208 = vsub.f32 %v1080, %v1144
        %v1209 = vsub.f32 %v1081, %v1145
        %v1210 = vsub.f32 %v1082, %v1146
        %v1211 = vsub.f32 %v1083, %v1147
        %v1212 = vsub.f32 %v1084, %v1148
        %v1213 = vsub.f32 %v1085, %v1149
        %v1214 = vsub.f32 %v1086, %v1150
        %v1215 = vsub.f32 %v1087, %v1151
        %v1216 = vsub.f32 %v1088, %v1152
        %v1217 = vsub.f32 %v1089, %v1153
        %v1218 = vsub.f32 %v1090, %v1154
        %v1219 = vsub.f32 %v1091, %v1155
        %v1220 = vsub.f32 %v1092, %v1156
        %v1221 = vsub.f32 %v1093, %v1157
        %v1222 = vsub.f32 %v1094, %v1158
        %v1223 = vsub.f32 %v1095, %v1159
        %v1224 = vsub.f32 %v1096, %v1160
        %v1225 = vsub.f32 %v1097, %v1161
        %v1226 = vsub.f32 %v1098, %v1162
        %v1227 = vsub.f32 %v1099, %v1163
        %v1228 = vsub.f32 %v1100, %v1164
        %v1229 = vsub.f32 %v1101, %v1165
        %v1230 = vsub.f32 %v1102, %v1166
        %v1231 = vsub.f32 %v1103, %v1167
        %v1232 = vsub.f32 %v1104, %v1168
        %v1233 = vsub.f32 %v1105, %v1169
        %v1234 = vsub.f32 %v1106, %v1170
        %v1235 = vsub.f32 %v1107, %v1171
        %v1236 = vsub.f32 %v1108, %v1172
        %v1237 = vsub.f32 %v1109, %v1173
        %v1238 = vsub.f32 %v1110, %v1174
        %v1239 = vsub.f32 %v1111, %v1175
        %v1240 = vsub.f32 %v1112, %v1176
        %v1241 = vsub.f32 %v1113, %v1177
        %v1242 = vsub.f32 %v1114, %v1178
        %v1243 = vsub.f32 %v1115, %v1179
        %v1244 = vsub.f32 %v1116, %v1180
        %v1245 = vsub.f32 %v1117, %v1181
        %v1246 = vsub.f32 %v1118, %v1182
        %v1247 = vsub.f32 %v1119, %v1183
        %v1248 = vsub.f32 %v1120, %v1184
        %v1249 = vsub.f32 %v1121, %v1185
        %v1250 = vsub.f32 %v1122, %v1186
        %v1251 = vsub.f32 %v1123, %v1187
        %v1252 = vsub.f32 %v1124, %v1188
        %v1253 = vsub.f32 %v1125, %v1189
        %v1254 = vsub.f32 %v1126, %v1190
        %v1255 = vsub.f32 %v1127, %v1191
        %v1256 = vsub.f32 %v1128, %v1192
        %v1257 = vsub.f32 %v1129, %v1193
        %v1258 = vsub.f32 %v1130, %v1194
        %v1259 = vsub.f32 %v1131, %v1195
        %v1260 = vsub.f32 %v1132, %v1196
        %v1261 = vsub.f32 %v1133, %v1197
        %v1262 = vmax.f32 %v1198, 0.0
        %v1263 = vmax.f32 %v1199, 0.0
        %v1264 = vmax.f32 %v1200, 0.0
        %v1265 = vmax.f32 %v1201, 0.0
        %v1266 = vmax.f32 %v1202, 0.0
        %v1267 = vmax.f32 %v1203, 0.0
        %v1268 = vmax.f32 %v1204, 0.0
        %v1269 = vmax.f32 %v1205, 0.0
        %v1270 = vmax.f32 %v1206, 0.0
        %v1271 = vmax.f32 %v1207, 0.0
        %v1272 = vmax.f32 %v1208, 0.0
        %v1273 = vmax.f32 %v1209, 0.0
        %v1274 = vmax.f32 %v1210, 0.0
        %v1275 = vmax.f32 %v1211, 0.0
        %v1276 = vmax.f32 %v1212, 0.0
        %v1277 = vmax.f32 %v1213, 0.0
        %v1278 = vmax.f32 %v1214, 0.0
        %v1279 = vmax.f32 %v1215, 0.0
        %v1280 = vmax.f32 %v1216, 0.0
        %v1281 = vmax.f32 %v1217, 0.0
        %v1282 = vmax.f32 %v1218, 0.0
        %v1283 = vmax.f32 %v1219, 0.0
        %v1284 = vmax.f32 %v1220, 0.0
        %v1285 = vmax.f32 %v1221, 0.0
        %v1286 = vmax.f32 %v1222, 0.0
        %v1287 = vmax.f32 %v1223, 0.0
        %v1288 = vmax.f32 %v1224, 0.0
        %v1289 = vmax.f32 %v1225, 0.0
        %v1290 = vmax.f32 %v1226, 0.0
        %v1291 = vmax.f32 %v1227, 0.0
        %v1292 = vmax.f32 %v1228, 0.0
        %v1293 = vmax.f32 %v1229, 0.0
        %v1294 = vmax.f32 %v1230, 0.0
        %v1295 = vmax.f32 %v1231, 0.0
        %v1296 = vmax.f32 %v1232, 0.0
        %v1297 = vmax.f32 %v1233, 0.0
        %v1298 = vmax.f32 %v1234, 0.0
        %v1299 = vmax.f32 %v1235, 0.0
        %v1300 = vmax.f32 %v1236, 0.0
        %v1301 = vmax.f32 %v1237, 0.0
        %v1302 = vmax.f32 %v1238, 0.0
        %v1303 = vmax.f32 %v1239, 0.0
        %v1304 = vmax.f32 %v1240, 0.0
        %v1305 = vmax.f32 %v1241, 0.0
        %v1306 = vmax.f32 %v1242, 0.0
        %v1307 = vmax.f32 %v1243, 0.0
        %v1308 = vmax.f32 %v1244, 0.0
        %v1309 = vmax.f32 %v1245, 0.0
        %v1310 = vmax.f32 %v1246, 0.0
        %v1311 = vmax.f32 %v1247, 0.0
        %v1312 = vmax.f32 %v1248, 0.0
        %v1313 = vmax.f32 %v1249, 0.0
        %v1314 = vmax.f32 %v1250, 0.0
        %v1315 = vmax.f32 %v1251, 0.0
        %v1316 = vmax.f32 %v1252, 0.0
        %v1317 = vmax.f32 %v1253, 0.0
        %v1318 = vmax.f32 %v1254, 0.0
        %v1319 = vmax.f32 %v1255, 0.0
        %v1320 = vmax.f32 %v1256, 0.0
        %v1321 = vmax.f32 %v1257, 0.0
        %v1322 = vmax.f32 %v1258, 0.0
        %v1323 = vmax.f32 %v1259, 0.0
        %v1324 = vmax.f32 %v1260, 0.0
        %v1325 = vmax.f32 %v1261, 0.0
        %v1326 = vrsqrt.pop %v1262
        %v1327 = vmul.f32 %v1262, %v1326
        %vm1328 = vcmp.eq.f32.partialorder %v1262, inf
        %v1329 = vsel %vm1328, %v1262, %v1327
        %vm1330 = vcmp.eq.f32.partialorder %v1262, 0.0
        %v1331 = vand.u32 %v1262, 2147483648
        %v1332 = vsel %vm1330, %v1331, %v1329
        %v1333 = vrsqrt.pop %v1263
        %v1334 = vmul.f32 %v1263, %v1333
        %vm1335 = vcmp.eq.f32.partialorder %v1263, inf
        %v1336 = vsel %vm1335, %v1263, %v1334
        %vm1337 = vcmp.eq.f32.partialorder %v1263, 0.0
        %v1338 = vand.u32 %v1263, 2147483648
        %v1339 = vsel %vm1337, %v1338, %v1336
        %v1340 = vrsqrt.pop %v1264
        %v1341 = vmul.f32 %v1264, %v1340
        %vm1342 = vcmp.eq.f32.partialorder %v1264, inf
        %v1343 = vsel %vm1342, %v1264, %v1341
        %vm1344 = vcmp.eq.f32.partialorder %v1264, 0.0
        %v1345 = vand.u32 %v1264, 2147483648
        %v1346 = vsel %vm1344, %v1345, %v1343
        %v1347 = vrsqrt.pop %v1265
        %v1348 = vmul.f32 %v1265, %v1347
        %vm1349 = vcmp.eq.f32.partialorder %v1265, inf
        %v1350 = vsel %vm1349, %v1265, %v1348
        %vm1351 = vcmp.eq.f32.partialorder %v1265, 0.0
        %v1352 = vand.u32 %v1265, 2147483648
        %v1353 = vsel %vm1351, %v1352, %v1350
        %v1354 = vrsqrt.pop %v1266
        %v1355 = vmul.f32 %v1266, %v1354
        %vm1356 = vcmp.eq.f32.partialorder %v1266, inf
        %v1357 = vsel %vm1356, %v1266, %v1355
        %vm1358 = vcmp.eq.f32.partialorder %v1266, 0.0
        %v1359 = vand.u32 %v1266, 2147483648
        %v1360 = vsel %vm1358, %v1359, %v1357
        %v1361 = vrsqrt.pop %v1267
        %v1362 = vmul.f32 %v1267, %v1361
        %vm1363 = vcmp.eq.f32.partialorder %v1267, inf
        %v1364 = vsel %vm1363, %v1267, %v1362
        %vm1365 = vcmp.eq.f32.partialorder %v1267, 0.0
        %v1366 = vand.u32 %v1267, 2147483648
        %v1367 = vsel %vm1365, %v1366, %v1364
        %v1368 = vrsqrt.pop %v1268
        %v1369 = vmul.f32 %v1268, %v1368
        %vm1370 = vcmp.eq.f32.partialorder %v1268, inf
        %v1371 = vsel %vm1370, %v1268, %v1369
        %vm1372 = vcmp.eq.f32.partialorder %v1268, 0.0
        %v1373 = vand.u32 %v1268, 2147483648
        %v1374 = vsel %vm1372, %v1373, %v1371
        %v1375 = vrsqrt.pop %v1269
        %v1376 = vmul.f32 %v1269, %v1375
        %vm1377 = vcmp.eq.f32.partialorder %v1269, inf
        %v1378 = vsel %vm1377, %v1269, %v1376
        %vm1379 = vcmp.eq.f32.partialorder %v1269, 0.0
        %v1380 = vand.u32 %v1269, 2147483648
        %v1381 = vsel %vm1379, %v1380, %v1378
        %v1382 = vrsqrt.pop %v1270
        %v1383 = vmul.f32 %v1270, %v1382
        %vm1384 = vcmp.eq.f32.partialorder %v1270, inf
        %v1385 = vsel %vm1384, %v1270, %v1383
        %vm1386 = vcmp.eq.f32.partialorder %v1270, 0.0
        %v1387 = vand.u32 %v1270, 2147483648
        %v1388 = vsel %vm1386, %v1387, %v1385
        %v1389 = vrsqrt.pop %v1271
        %v1390 = vmul.f32 %v1271, %v1389
        %vm1391 = vcmp.eq.f32.partialorder %v1271, inf
        %v1392 = vsel %vm1391, %v1271, %v1390
        %vm1393 = vcmp.eq.f32.partialorder %v1271, 0.0
        %v1394 = vand.u32 %v1271, 2147483648
        %v1395 = vsel %vm1393, %v1394, %v1392
        %v1396 = vrsqrt.pop %v1272
        %v1397 = vmul.f32 %v1272, %v1396
        %vm1398 = vcmp.eq.f32.partialorder %v1272, inf
        %v1399 = vsel %vm1398, %v1272, %v1397
        %vm1400 = vcmp.eq.f32.partialorder %v1272, 0.0
        %v1401 = vand.u32 %v1272, 2147483648
        %v1402 = vsel %vm1400, %v1401, %v1399
        %v1403 = vrsqrt.pop %v1273
        %v1404 = vmul.f32 %v1273, %v1403
        %vm1405 = vcmp.eq.f32.partialorder %v1273, inf
        %v1406 = vsel %vm1405, %v1273, %v1404
        %vm1407 = vcmp.eq.f32.partialorder %v1273, 0.0
        %v1408 = vand.u32 %v1273, 2147483648
        %v1409 = vsel %vm1407, %v1408, %v1406
        %v1410 = vrsqrt.pop %v1274
        %v1411 = vmul.f32 %v1274, %v1410
        %vm1412 = vcmp.eq.f32.partialorder %v1274, inf
        %v1413 = vsel %vm1412, %v1274, %v1411
        %vm1414 = vcmp.eq.f32.partialorder %v1274, 0.0
        %v1415 = vand.u32 %v1274, 2147483648
        %v1416 = vsel %vm1414, %v1415, %v1413
        %v1417 = vrsqrt.pop %v1275
        %v1418 = vmul.f32 %v1275, %v1417
        %vm1419 = vcmp.eq.f32.partialorder %v1275, inf
        %v1420 = vsel %vm1419, %v1275, %v1418
        %vm1421 = vcmp.eq.f32.partialorder %v1275, 0.0
        %v1422 = vand.u32 %v1275, 2147483648
        %v1423 = vsel %vm1421, %v1422, %v1420
        %v1424 = vrsqrt.pop %v1276
        %v1425 = vmul.f32 %v1276, %v1424
        %vm1426 = vcmp.eq.f32.partialorder %v1276, inf
        %v1427 = vsel %vm1426, %v1276, %v1425
        %vm1428 = vcmp.eq.f32.partialorder %v1276, 0.0
        %v1429 = vand.u32 %v1276, 2147483648
        %v1430 = vsel %vm1428, %v1429, %v1427
        %v1431 = vrsqrt.pop %v1277
        %v1432 = vmul.f32 %v1277, %v1431
        %vm1433 = vcmp.eq.f32.partialorder %v1277, inf
        %v1434 = vsel %vm1433, %v1277, %v1432
        %vm1435 = vcmp.eq.f32.partialorder %v1277, 0.0
        %v1436 = vand.u32 %v1277, 2147483648
        %v1437 = vsel %vm1435, %v1436, %v1434
        %v1438 = vrsqrt.pop %v1278
        %v1439 = vmul.f32 %v1278, %v1438
        %vm1440 = vcmp.eq.f32.partialorder %v1278, inf
        %v1441 = vsel %vm1440, %v1278, %v1439
        %vm1442 = vcmp.eq.f32.partialorder %v1278, 0.0
        %v1443 = vand.u32 %v1278, 2147483648
        %v1444 = vsel %vm1442, %v1443, %v1441
        %v1445 = vrsqrt.pop %v1279
        %v1446 = vmul.f32 %v1279, %v1445
        %vm1447 = vcmp.eq.f32.partialorder %v1279, inf
        %v1448 = vsel %vm1447, %v1279, %v1446
        %vm1449 = vcmp.eq.f32.partialorder %v1279, 0.0
        %v1450 = vand.u32 %v1279, 2147483648
        %v1451 = vsel %vm1449, %v1450, %v1448
        %v1452 = vrsqrt.pop %v1280
        %v1453 = vmul.f32 %v1280, %v1452
        %vm1454 = vcmp.eq.f32.partialorder %v1280, inf
        %v1455 = vsel %vm1454, %v1280, %v1453
        %vm1456 = vcmp.eq.f32.partialorder %v1280, 0.0
        %v1457 = vand.u32 %v1280, 2147483648
        %v1458 = vsel %vm1456, %v1457, %v1455
        %v1459 = vrsqrt.pop %v1281
        %v1460 = vmul.f32 %v1281, %v1459
        %vm1461 = vcmp.eq.f32.partialorder %v1281, inf
        %v1462 = vsel %vm1461, %v1281, %v1460
        %vm1463 = vcmp.eq.f32.partialorder %v1281, 0.0
        %v1464 = vand.u32 %v1281, 2147483648
        %v1465 = vsel %vm1463, %v1464, %v1462
        %v1466 = vrsqrt.pop %v1282
        %v1467 = vmul.f32 %v1282, %v1466
        %vm1468 = vcmp.eq.f32.partialorder %v1282, inf
        %v1469 = vsel %vm1468, %v1282, %v1467
        %vm1470 = vcmp.eq.f32.partialorder %v1282, 0.0
        %v1471 = vand.u32 %v1282, 2147483648
        %v1472 = vsel %vm1470, %v1471, %v1469
        %v1473 = vrsqrt.pop %v1283
        %v1474 = vmul.f32 %v1283, %v1473
        %vm1475 = vcmp.eq.f32.partialorder %v1283, inf
        %v1476 = vsel %vm1475, %v1283, %v1474
        %vm1477 = vcmp.eq.f32.partialorder %v1283, 0.0
        %v1478 = vand.u32 %v1283, 2147483648
        %v1479 = vsel %vm1477, %v1478, %v1476
        %v1480 = vrsqrt.pop %v1284
        %v1481 = vmul.f32 %v1284, %v1480
        %vm1482 = vcmp.eq.f32.partialorder %v1284, inf
        %v1483 = vsel %vm1482, %v1284, %v1481
        %vm1484 = vcmp.eq.f32.partialorder %v1284, 0.0
        %v1485 = vand.u32 %v1284, 2147483648
        %v1486 = vsel %vm1484, %v1485, %v1483
        %v1487 = vrsqrt.pop %v1285
        %v1488 = vmul.f32 %v1285, %v1487
        %vm1489 = vcmp.eq.f32.partialorder %v1285, inf
        %v1490 = vsel %vm1489, %v1285, %v1488
        %vm1491 = vcmp.eq.f32.partialorder %v1285, 0.0
        %v1492 = vand.u32 %v1285, 2147483648
        %v1493 = vsel %vm1491, %v1492, %v1490
        %v1494 = vrsqrt.pop %v1286
        %v1495 = vmul.f32 %v1286, %v1494
        %vm1496 = vcmp.eq.f32.partialorder %v1286, inf
        %v1497 = vsel %vm1496, %v1286, %v1495
        %vm1498 = vcmp.eq.f32.partialorder %v1286, 0.0
        %v1499 = vand.u32 %v1286, 2147483648
        %v1500 = vsel %vm1498, %v1499, %v1497
        %v1501 = vrsqrt.pop %v1287
        %v1502 = vmul.f32 %v1287, %v1501
        %vm1503 = vcmp.eq.f32.partialorder %v1287, inf
        %v1504 = vsel %vm1503, %v1287, %v1502
        %vm1505 = vcmp.eq.f32.partialorder %v1287, 0.0
        %v1506 = vand.u32 %v1287, 2147483648
        %v1507 = vsel %vm1505, %v1506, %v1504
        %v1508 = vrsqrt.pop %v1288
        %v1509 = vmul.f32 %v1288, %v1508
        %vm1510 = vcmp.eq.f32.partialorder %v1288, inf
        %v1511 = vsel %vm1510, %v1288, %v1509
        %vm1512 = vcmp.eq.f32.partialorder %v1288, 0.0
        %v1513 = vand.u32 %v1288, 2147483648
        %v1514 = vsel %vm1512, %v1513, %v1511
        %v1515 = vrsqrt.pop %v1289
        %v1516 = vmul.f32 %v1289, %v1515
        %vm1517 = vcmp.eq.f32.partialorder %v1289, inf
        %v1518 = vsel %vm1517, %v1289, %v1516
        %vm1519 = vcmp.eq.f32.partialorder %v1289, 0.0
        %v1520 = vand.u32 %v1289, 2147483648
        %v1521 = vsel %vm1519, %v1520, %v1518
        %v1522 = vrsqrt.pop %v1290
        %v1523 = vmul.f32 %v1290, %v1522
        %vm1524 = vcmp.eq.f32.partialorder %v1290, inf
        %v1525 = vsel %vm1524, %v1290, %v1523
        %vm1526 = vcmp.eq.f32.partialorder %v1290, 0.0
        %v1527 = vand.u32 %v1290, 2147483648
        %v1528 = vsel %vm1526, %v1527, %v1525
        %v1529 = vrsqrt.pop %v1291
        %v1530 = vmul.f32 %v1291, %v1529
        %vm1531 = vcmp.eq.f32.partialorder %v1291, inf
        %v1532 = vsel %vm1531, %v1291, %v1530
        %vm1533 = vcmp.eq.f32.partialorder %v1291, 0.0
        %v1534 = vand.u32 %v1291, 2147483648
        %v1535 = vsel %vm1533, %v1534, %v1532
        %v1536 = vrsqrt.pop %v1292
        %v1537 = vmul.f32 %v1292, %v1536
        %vm1538 = vcmp.eq.f32.partialorder %v1292, inf
        %v1539 = vsel %vm1538, %v1292, %v1537
        %vm1540 = vcmp.eq.f32.partialorder %v1292, 0.0
        %v1541 = vand.u32 %v1292, 2147483648
        %v1542 = vsel %vm1540, %v1541, %v1539
        %v1543 = vrsqrt.pop %v1293
        %v1544 = vmul.f32 %v1293, %v1543
        %vm1545 = vcmp.eq.f32.partialorder %v1293, inf
        %v1546 = vsel %vm1545, %v1293, %v1544
        %vm1547 = vcmp.eq.f32.partialorder %v1293, 0.0
        %v1548 = vand.u32 %v1293, 2147483648
        %v1549 = vsel %vm1547, %v1548, %v1546
        %v1550 = vrsqrt.pop %v1294
        %v1551 = vmul.f32 %v1294, %v1550
        %vm1552 = vcmp.eq.f32.partialorder %v1294, inf
        %v1553 = vsel %vm1552, %v1294, %v1551
        %vm1554 = vcmp.eq.f32.partialorder %v1294, 0.0
        %v1555 = vand.u32 %v1294, 2147483648
        %v1556 = vsel %vm1554, %v1555, %v1553
        %v1557 = vrsqrt.pop %v1295
        %v1558 = vmul.f32 %v1295, %v1557
        %vm1559 = vcmp.eq.f32.partialorder %v1295, inf
        %v1560 = vsel %vm1559, %v1295, %v1558
        %vm1561 = vcmp.eq.f32.partialorder %v1295, 0.0
        %v1562 = vand.u32 %v1295, 2147483648
        %v1563 = vsel %vm1561, %v1562, %v1560
        %v1564 = vrsqrt.pop %v1296
        %v1565 = vmul.f32 %v1296, %v1564
        %vm1566 = vcmp.eq.f32.partialorder %v1296, inf
        %v1567 = vsel %vm1566, %v1296, %v1565
        %vm1568 = vcmp.eq.f32.partialorder %v1296, 0.0
        %v1569 = vand.u32 %v1296, 2147483648
        %v1570 = vsel %vm1568, %v1569, %v1567
        %v1571 = vrsqrt.pop %v1297
        %v1572 = vmul.f32 %v1297, %v1571
        %vm1573 = vcmp.eq.f32.partialorder %v1297, inf
        %v1574 = vsel %vm1573, %v1297, %v1572
        %vm1575 = vcmp.eq.f32.partialorder %v1297, 0.0
        %v1576 = vand.u32 %v1297, 2147483648
        %v1577 = vsel %vm1575, %v1576, %v1574
        %v1578 = vrsqrt.pop %v1298
        %v1579 = vmul.f32 %v1298, %v1578
        %vm1580 = vcmp.eq.f32.partialorder %v1298, inf
        %v1581 = vsel %vm1580, %v1298, %v1579
        %vm1582 = vcmp.eq.f32.partialorder %v1298, 0.0
        %v1583 = vand.u32 %v1298, 2147483648
        %v1584 = vsel %vm1582, %v1583, %v1581
        %v1585 = vrsqrt.pop %v1299
        %v1586 = vmul.f32 %v1299, %v1585
        %vm1587 = vcmp.eq.f32.partialorder %v1299, inf
        %v1588 = vsel %vm1587, %v1299, %v1586
        %vm1589 = vcmp.eq.f32.partialorder %v1299, 0.0
        %v1590 = vand.u32 %v1299, 2147483648
        %v1591 = vsel %vm1589, %v1590, %v1588
        %v1592 = vrsqrt.pop %v1300
        %v1593 = vmul.f32 %v1300, %v1592
        %vm1594 = vcmp.eq.f32.partialorder %v1300, inf
        %v1595 = vsel %vm1594, %v1300, %v1593
        %vm1596 = vcmp.eq.f32.partialorder %v1300, 0.0
        %v1597 = vand.u32 %v1300, 2147483648
        %v1598 = vsel %vm1596, %v1597, %v1595
        %v1599 = vrsqrt.pop %v1301
        %v1600 = vmul.f32 %v1301, %v1599
        %vm1601 = vcmp.eq.f32.partialorder %v1301, inf
        %v1602 = vsel %vm1601, %v1301, %v1600
        %vm1603 = vcmp.eq.f32.partialorder %v1301, 0.0
        %v1604 = vand.u32 %v1301, 2147483648
        %v1605 = vsel %vm1603, %v1604, %v1602
        %v1606 = vrsqrt.pop %v1302
        %v1607 = vmul.f32 %v1302, %v1606
        %vm1608 = vcmp.eq.f32.partialorder %v1302, inf
        %v1609 = vsel %vm1608, %v1302, %v1607
        %vm1610 = vcmp.eq.f32.partialorder %v1302, 0.0
        %v1611 = vand.u32 %v1302, 2147483648
        %v1612 = vsel %vm1610, %v1611, %v1609
        %v1613 = vrsqrt.pop %v1303
        %v1614 = vmul.f32 %v1303, %v1613
        %vm1615 = vcmp.eq.f32.partialorder %v1303, inf
        %v1616 = vsel %vm1615, %v1303, %v1614
        %vm1617 = vcmp.eq.f32.partialorder %v1303, 0.0
        %v1618 = vand.u32 %v1303, 2147483648
        %v1619 = vsel %vm1617, %v1618, %v1616
        %v1620 = vrsqrt.pop %v1304
        %v1621 = vmul.f32 %v1304, %v1620
        %vm1622 = vcmp.eq.f32.partialorder %v1304, inf
        %v1623 = vsel %vm1622, %v1304, %v1621
        %vm1624 = vcmp.eq.f32.partialorder %v1304, 0.0
        %v1625 = vand.u32 %v1304, 2147483648
        %v1626 = vsel %vm1624, %v1625, %v1623
        %v1627 = vrsqrt.pop %v1305
        %v1628 = vmul.f32 %v1305, %v1627
        %vm1629 = vcmp.eq.f32.partialorder %v1305, inf
        %v1630 = vsel %vm1629, %v1305, %v1628
        %vm1631 = vcmp.eq.f32.partialorder %v1305, 0.0
        %v1632 = vand.u32 %v1305, 2147483648
        %v1633 = vsel %vm1631, %v1632, %v1630
        %v1634 = vrsqrt.pop %v1306
        %v1635 = vmul.f32 %v1306, %v1634
        %vm1636 = vcmp.eq.f32.partialorder %v1306, inf
        %v1637 = vsel %vm1636, %v1306, %v1635
        %vm1638 = vcmp.eq.f32.partialorder %v1306, 0.0
        %v1639 = vand.u32 %v1306, 2147483648
        %v1640 = vsel %vm1638, %v1639, %v1637
        %v1641 = vrsqrt.pop %v1307
        %v1642 = vmul.f32 %v1307, %v1641
        %vm1643 = vcmp.eq.f32.partialorder %v1307, inf
        %v1644 = vsel %vm1643, %v1307, %v1642
        %vm1645 = vcmp.eq.f32.partialorder %v1307, 0.0
        %v1646 = vand.u32 %v1307, 2147483648
        %v1647 = vsel %vm1645, %v1646, %v1644
        %v1648 = vrsqrt.pop %v1308
        %v1649 = vmul.f32 %v1308, %v1648
        %vm1650 = vcmp.eq.f32.partialorder %v1308, inf
        %v1651 = vsel %vm1650, %v1308, %v1649
        %vm1652 = vcmp.eq.f32.partialorder %v1308, 0.0
        %v1653 = vand.u32 %v1308, 2147483648
        %v1654 = vsel %vm1652, %v1653, %v1651
        %v1655 = vrsqrt.pop %v1309
        %v1656 = vmul.f32 %v1309, %v1655
        %vm1657 = vcmp.eq.f32.partialorder %v1309, inf
        %v1658 = vsel %vm1657, %v1309, %v1656
        %vm1659 = vcmp.eq.f32.partialorder %v1309, 0.0
        %v1660 = vand.u32 %v1309, 2147483648
        %v1661 = vsel %vm1659, %v1660, %v1658
        %v1662 = vrsqrt.pop %v1310
        %v1663 = vmul.f32 %v1310, %v1662
        %vm1664 = vcmp.eq.f32.partialorder %v1310, inf
        %v1665 = vsel %vm1664, %v1310, %v1663
        %vm1666 = vcmp.eq.f32.partialorder %v1310, 0.0
        %v1667 = vand.u32 %v1310, 2147483648
        %v1668 = vsel %vm1666, %v1667, %v1665
        %v1669 = vrsqrt.pop %v1311
        %v1670 = vmul.f32 %v1311, %v1669
        %vm1671 = vcmp.eq.f32.partialorder %v1311, inf
        %v1672 = vsel %vm1671, %v1311, %v1670
        %vm1673 = vcmp.eq.f32.partialorder %v1311, 0.0
        %v1674 = vand.u32 %v1311, 2147483648
        %v1675 = vsel %vm1673, %v1674, %v1672
        %v1676 = vrsqrt.pop %v1312
        %v1677 = vmul.f32 %v1312, %v1676
        %vm1678 = vcmp.eq.f32.partialorder %v1312, inf
        %v1679 = vsel %vm1678, %v1312, %v1677
        %vm1680 = vcmp.eq.f32.partialorder %v1312, 0.0
        %v1681 = vand.u32 %v1312, 2147483648
        %v1682 = vsel %vm1680, %v1681, %v1679
        %v1683 = vrsqrt.pop %v1313
        %v1684 = vmul.f32 %v1313, %v1683
        %vm1685 = vcmp.eq.f32.partialorder %v1313, inf
        %v1686 = vsel %vm1685, %v1313, %v1684
        %vm1687 = vcmp.eq.f32.partialorder %v1313, 0.0
        %v1688 = vand.u32 %v1313, 2147483648
        %v1689 = vsel %vm1687, %v1688, %v1686
        %v1690 = vrsqrt.pop %v1314
        %v1691 = vmul.f32 %v1314, %v1690
        %vm1692 = vcmp.eq.f32.partialorder %v1314, inf
        %v1693 = vsel %vm1692, %v1314, %v1691
        %vm1694 = vcmp.eq.f32.partialorder %v1314, 0.0
        %v1695 = vand.u32 %v1314, 2147483648
        %v1696 = vsel %vm1694, %v1695, %v1693
        %v1697 = vrsqrt.pop %v1315
        %v1698 = vmul.f32 %v1315, %v1697
        %vm1699 = vcmp.eq.f32.partialorder %v1315, inf
        %v1700 = vsel %vm1699, %v1315, %v1698
        %vm1701 = vcmp.eq.f32.partialorder %v1315, 0.0
        %v1702 = vand.u32 %v1315, 2147483648
        %v1703 = vsel %vm1701, %v1702, %v1700
        %v1704 = vrsqrt.pop %v1316
        %v1705 = vmul.f32 %v1316, %v1704
        %vm1706 = vcmp.eq.f32.partialorder %v1316, inf
        %v1707 = vsel %vm1706, %v1316, %v1705
        %vm1708 = vcmp.eq.f32.partialorder %v1316, 0.0
        %v1709 = vand.u32 %v1316, 2147483648
        %v1710 = vsel %vm1708, %v1709, %v1707
        %v1711 = vrsqrt.pop %v1317
        %v1712 = vmul.f32 %v1317, %v1711
        %vm1713 = vcmp.eq.f32.partialorder %v1317, inf
        %v1714 = vsel %vm1713, %v1317, %v1712
        %vm1715 = vcmp.eq.f32.partialorder %v1317, 0.0
        %v1716 = vand.u32 %v1317, 2147483648
        %v1717 = vsel %vm1715, %v1716, %v1714
        %v1718 = vrsqrt.pop %v1318
        %v1719 = vmul.f32 %v1318, %v1718
        %vm1720 = vcmp.eq.f32.partialorder %v1318, inf
        %v1721 = vsel %vm1720, %v1318, %v1719
        %vm1722 = vcmp.eq.f32.partialorder %v1318, 0.0
        %v1723 = vand.u32 %v1318, 2147483648
        %v1724 = vsel %vm1722, %v1723, %v1721
        %v1725 = vrsqrt.pop %v1319
        %v1726 = vmul.f32 %v1319, %v1725
        %vm1727 = vcmp.eq.f32.partialorder %v1319, inf
        %v1728 = vsel %vm1727, %v1319, %v1726
        %vm1729 = vcmp.eq.f32.partialorder %v1319, 0.0
        %v1730 = vand.u32 %v1319, 2147483648
        %v1731 = vsel %vm1729, %v1730, %v1728
        %v1732 = vrsqrt.pop %v1320
        %v1733 = vmul.f32 %v1320, %v1732
        %vm1734 = vcmp.eq.f32.partialorder %v1320, inf
        %v1735 = vsel %vm1734, %v1320, %v1733
        %vm1736 = vcmp.eq.f32.partialorder %v1320, 0.0
        %v1737 = vand.u32 %v1320, 2147483648
        %v1738 = vsel %vm1736, %v1737, %v1735
        %v1739 = vrsqrt.pop %v1321
        %v1740 = vmul.f32 %v1321, %v1739
        %vm1741 = vcmp.eq.f32.partialorder %v1321, inf
        %v1742 = vsel %vm1741, %v1321, %v1740
        %vm1743 = vcmp.eq.f32.partialorder %v1321, 0.0
        %v1744 = vand.u32 %v1321, 2147483648
        %v1745 = vsel %vm1743, %v1744, %v1742
        %v1746 = vrsqrt.pop %v1322
        %v1747 = vmul.f32 %v1322, %v1746
        %vm1748 = vcmp.eq.f32.partialorder %v1322, inf
        %v1749 = vsel %vm1748, %v1322, %v1747
        %vm1750 = vcmp.eq.f32.partialorder %v1322, 0.0
        %v1751 = vand.u32 %v1322, 2147483648
        %v1752 = vsel %vm1750, %v1751, %v1749
        %v1753 = vrsqrt.pop %v1323
        %v1754 = vmul.f32 %v1323, %v1753
        %vm1755 = vcmp.eq.f32.partialorder %v1323, inf
        %v1756 = vsel %vm1755, %v1323, %v1754
        %vm1757 = vcmp.eq.f32.partialorder %v1323, 0.0
        %v1758 = vand.u32 %v1323, 2147483648
        %v1759 = vsel %vm1757, %v1758, %v1756
        %v1760 = vrsqrt.pop %v1324
        %v1761 = vmul.f32 %v1324, %v1760
        %vm1762 = vcmp.eq.f32.partialorder %v1324, inf
        %v1763 = vsel %vm1762, %v1324, %v1761
        %vm1764 = vcmp.eq.f32.partialorder %v1324, 0.0
        %v1765 = vand.u32 %v1324, 2147483648
        %v1766 = vsel %vm1764, %v1765, %v1763
        %v1767 = vrsqrt.pop %v1325
        %v1768 = vmul.f32 %v1325, %v1767
        %vm1769 = vcmp.eq.f32.partialorder %v1325, inf
        %v1770 = vsel %vm1769, %v1325, %v1768
        %vm1771 = vcmp.eq.f32.partialorder %v1325, 0.0
        %v1772 = vand.u32 %v1325, 2147483648
        %v1773 = vsel %vm1771, %v1772, %v1770
        %v1774 = vld [vmem:[%s276] sm:$0xff]
        %v1775 = vld [vmem:[%s276 + $0x8] sm:$0xff]
        %v1776 = vld [vmem:[%s276 + $0x10] sm:$0xff]
        %v1777 = vld [vmem:[%s276 + $0x18] sm:$0xff]
        %v1778 = vld [vmem:[%s276 + $0x20] sm:$0xff]
        %v1779 = vld [vmem:[%s276 + $0x28] sm:$0xff]
        %v1780 = vld [vmem:[%s276 + $0x30] sm:$0xff]
        %v1781 = vld [vmem:[%s276 + $0x38] sm:$0xff]
        %v1782 = vld [vmem:[%s276 + $0x40] sm:$0xff]
        %v1783 = vld [vmem:[%s276 + $0x48] sm:$0xff]
        %v1784 = vld [vmem:[%s276 + $0x50] sm:$0xff]
        %v1785 = vld [vmem:[%s276 + $0x58] sm:$0xff]
        %v1786 = vld [vmem:[%s276 + $0x60] sm:$0xff]
        %v1787 = vld [vmem:[%s276 + $0x68] sm:$0xff]
        %v1788 = vld [vmem:[%s276 + $0x70] sm:$0xff]
        %v1789 = vld [vmem:[%s276 + $0x78] sm:$0xff]
        %v1790 = vld [vmem:[%s276 + $0x80] sm:$0xff]
        %v1791 = vld [vmem:[%s276 + $0x88] sm:$0xff]
        %v1792 = vld [vmem:[%s276 + $0x90] sm:$0xff]
        %v1793 = vld [vmem:[%s276 + $0x98] sm:$0xff]
        %v1794 = vld [vmem:[%s276 + $0xa0] sm:$0xff]
        %v1795 = vld [vmem:[%s276 + $0xa8] sm:$0xff]
        %v1796 = vld [vmem:[%s276 + $0xb0] sm:$0xff]
        %v1797 = vld [vmem:[%s276 + $0xb8] sm:$0xff]
        %v1798 = vld [vmem:[%s276 + $0xc0] sm:$0xff]
        %v1799 = vld [vmem:[%s276 + $0xc8] sm:$0xff]
        %v1800 = vld [vmem:[%s276 + $0xd0] sm:$0xff]
        %v1801 = vld [vmem:[%s276 + $0xd8] sm:$0xff]
        %v1802 = vld [vmem:[%s276 + $0xe0] sm:$0xff]
        %v1803 = vld [vmem:[%s276 + $0xe8] sm:$0xff]
        %v1804 = vld [vmem:[%s276 + $0xf0] sm:$0xff]
        %v1805 = vld [vmem:[%s276 + $0xf8] sm:$0xff]
        %v1806 = vld [vmem:[%s276 + $0x100] sm:$0xff]
        %v1807 = vld [vmem:[%s276 + $0x108] sm:$0xff]
        %v1808 = vld [vmem:[%s276 + $0x110] sm:$0xff]
        %v1809 = vld [vmem:[%s276 + $0x118] sm:$0xff]
        %v1810 = vld [vmem:[%s276 + $0x120] sm:$0xff]
        %v1811 = vld [vmem:[%s276 + $0x128] sm:$0xff]
        %v1812 = vld [vmem:[%s276 + $0x130] sm:$0xff]
        %v1813 = vld [vmem:[%s276 + $0x138] sm:$0xff]
        %v1814 = vld [vmem:[%s276 + $0x140] sm:$0xff]
        %v1815 = vld [vmem:[%s276 + $0x148] sm:$0xff]
        %v1816 = vld [vmem:[%s276 + $0x150] sm:$0xff]
        %v1817 = vld [vmem:[%s276 + $0x158] sm:$0xff]
        %v1818 = vld [vmem:[%s276 + $0x160] sm:$0xff]
        %v1819 = vld [vmem:[%s276 + $0x168] sm:$0xff]
        %v1820 = vld [vmem:[%s276 + $0x170] sm:$0xff]
        %v1821 = vld [vmem:[%s276 + $0x178] sm:$0xff]
        %v1822 = vld [vmem:[%s276 + $0x180] sm:$0xff]
        %v1823 = vld [vmem:[%s276 + $0x188] sm:$0xff]
        %v1824 = vld [vmem:[%s276 + $0x190] sm:$0xff]
        %v1825 = vld [vmem:[%s276 + $0x198] sm:$0xff]
        %v1826 = vld [vmem:[%s276 + $0x1a0] sm:$0xff]
        %v1827 = vld [vmem:[%s276 + $0x1a8] sm:$0xff]
        %v1828 = vld [vmem:[%s276 + $0x1b0] sm:$0xff]
        %v1829 = vld [vmem:[%s276 + $0x1b8] sm:$0xff]
        %v1830 = vld [vmem:[%s276 + $0x1c0] sm:$0xff]
        %v1831 = vld [vmem:[%s276 + $0x1c8] sm:$0xff]
        %v1832 = vld [vmem:[%s276 + $0x1d0] sm:$0xff]
        %v1833 = vld [vmem:[%s276 + $0x1d8] sm:$0xff]
        %v1834 = vld [vmem:[%s276 + $0x1e0] sm:$0xff]
        %v1835 = vld [vmem:[%s276 + $0x1e8] sm:$0xff]
        %v1836 = vld [vmem:[%s276 + $0x1f0] sm:$0xff]
        %v1837 = vld [vmem:[%s276 + $0x1f8] sm:$0xff]
        %v1838 = vsub.f32 1.0, %v1774
        %v1839 = vsub.f32 1.0, %v1775
        %v1840 = vsub.f32 1.0, %v1776
        %v1841 = vsub.f32 1.0, %v1777
        %v1842 = vsub.f32 1.0, %v1778
        %v1843 = vsub.f32 1.0, %v1779
        %v1844 = vsub.f32 1.0, %v1780
        %v1845 = vsub.f32 1.0, %v1781
        %v1846 = vsub.f32 1.0, %v1782
        %v1847 = vsub.f32 1.0, %v1783
        %v1848 = vsub.f32 1.0, %v1784
        %v1849 = vsub.f32 1.0, %v1785
        %v1850 = vsub.f32 1.0, %v1786
        %v1851 = vsub.f32 1.0, %v1787
        %v1852 = vsub.f32 1.0, %v1788
        %v1853 = vsub.f32 1.0, %v1789
        %v1854 = vsub.f32 1.0, %v1790
        %v1855 = vsub.f32 1.0, %v1791
        %v1856 = vsub.f32 1.0, %v1792
        %v1857 = vsub.f32 1.0, %v1793
        %v1858 = vsub.f32 1.0, %v1794
        %v1859 = vsub.f32 1.0, %v1795
        %v1860 = vsub.f32 1.0, %v1796
        %v1861 = vsub.f32 1.0, %v1797
        %v1862 = vsub.f32 1.0, %v1798
        %v1863 = vsub.f32 1.0, %v1799
        %v1864 = vsub.f32 1.0, %v1800
        %v1865 = vsub.f32 1.0, %v1801
        %v1866 = vsub.f32 1.0, %v1802
        %v1867 = vsub.f32 1.0, %v1803
        %v1868 = vsub.f32 1.0, %v1804
        %v1869 = vsub.f32 1.0, %v1805
        %v1870 = vsub.f32 1.0, %v1806
        %v1871 = vsub.f32 1.0, %v1807
        %v1872 = vsub.f32 1.0, %v1808
        %v1873 = vsub.f32 1.0, %v1809
        %v1874 = vsub.f32 1.0, %v1810
        %v1875 = vsub.f32 1.0, %v1811
        %v1876 = vsub.f32 1.0, %v1812
        %v1877 = vsub.f32 1.0, %v1813
        %v1878 = vsub.f32 1.0, %v1814
        %v1879 = vsub.f32 1.0, %v1815
        %v1880 = vsub.f32 1.0, %v1816
        %v1881 = vsub.f32 1.0, %v1817
        %v1882 = vsub.f32 1.0, %v1818
        %v1883 = vsub.f32 1.0, %v1819
        %v1884 = vsub.f32 1.0, %v1820
        %v1885 = vsub.f32 1.0, %v1821
        %v1886 = vsub.f32 1.0, %v1822
        %v1887 = vsub.f32 1.0, %v1823
        %v1888 = vsub.f32 1.0, %v1824
        %v1889 = vsub.f32 1.0, %v1825
        %v1890 = vsub.f32 1.0, %v1826
        %v1891 = vsub.f32 1.0, %v1827
        %v1892 = vsub.f32 1.0, %v1828
        %v1893 = vsub.f32 1.0, %v1829
        %v1894 = vsub.f32 1.0, %v1830
        %v1895 = vsub.f32 1.0, %v1831
        %v1896 = vsub.f32 1.0, %v1832
        %v1897 = vsub.f32 1.0, %v1833
        %v1898 = vsub.f32 1.0, %v1834
        %v1899 = vsub.f32 1.0, %v1835
        %v1900 = vsub.f32 1.0, %v1836
        %v1901 = vsub.f32 1.0, %v1837
        %v1902 = vsub.f32 %v1332, %v1838
        %v1903 = vsub.f32 %v1339, %v1839
        %v1904 = vsub.f32 %v1346, %v1840
        %v1905 = vsub.f32 %v1353, %v1841
        %v1906 = vsub.f32 %v1360, %v1842
        %v1907 = vsub.f32 %v1367, %v1843
        %v1908 = vsub.f32 %v1374, %v1844
        %v1909 = vsub.f32 %v1381, %v1845
        %v1910 = vsub.f32 %v1388, %v1846
        %v1911 = vsub.f32 %v1395, %v1847
        %v1912 = vsub.f32 %v1402, %v1848
        %v1913 = vsub.f32 %v1409, %v1849
        %v1914 = vsub.f32 %v1416, %v1850
        %v1915 = vsub.f32 %v1423, %v1851
        %v1916 = vsub.f32 %v1430, %v1852
        %v1917 = vsub.f32 %v1437, %v1853
        %v1918 = vsub.f32 %v1444, %v1854
        %v1919 = vsub.f32 %v1451, %v1855
        %v1920 = vsub.f32 %v1458, %v1856
        %v1921 = vsub.f32 %v1465, %v1857
        %v1922 = vsub.f32 %v1472, %v1858
        %v1923 = vsub.f32 %v1479, %v1859
        %v1924 = vsub.f32 %v1486, %v1860
        %v1925 = vsub.f32 %v1493, %v1861
        %v1926 = vsub.f32 %v1500, %v1862
        %v1927 = vsub.f32 %v1507, %v1863
        %v1928 = vsub.f32 %v1514, %v1864
        %v1929 = vsub.f32 %v1521, %v1865
        %v1930 = vsub.f32 %v1528, %v1866
        %v1931 = vsub.f32 %v1535, %v1867
        %v1932 = vsub.f32 %v1542, %v1868
        %v1933 = vsub.f32 %v1549, %v1869
        %v1934 = vsub.f32 %v1556, %v1870
        %v1935 = vsub.f32 %v1563, %v1871
        %v1936 = vsub.f32 %v1570, %v1872
        %v1937 = vsub.f32 %v1577, %v1873
        %v1938 = vsub.f32 %v1584, %v1874
        %v1939 = vsub.f32 %v1591, %v1875
        %v1940 = vsub.f32 %v1598, %v1876
        %v1941 = vsub.f32 %v1605, %v1877
        %v1942 = vsub.f32 %v1612, %v1878
        %v1943 = vsub.f32 %v1619, %v1879
        %v1944 = vsub.f32 %v1626, %v1880
        %v1945 = vsub.f32 %v1633, %v1881
        %v1946 = vsub.f32 %v1640, %v1882
        %v1947 = vsub.f32 %v1647, %v1883
        %v1948 = vsub.f32 %v1654, %v1884
        %v1949 = vsub.f32 %v1661, %v1885
        %v1950 = vsub.f32 %v1668, %v1886
        %v1951 = vsub.f32 %v1675, %v1887
        %v1952 = vsub.f32 %v1682, %v1888
        %v1953 = vsub.f32 %v1689, %v1889
        %v1954 = vsub.f32 %v1696, %v1890
        %v1955 = vsub.f32 %v1703, %v1891
        %v1956 = vsub.f32 %v1710, %v1892
        %v1957 = vsub.f32 %v1717, %v1893
        %v1958 = vsub.f32 %v1724, %v1894
        %v1959 = vsub.f32 %v1731, %v1895
        %v1960 = vsub.f32 %v1738, %v1896
        %v1961 = vsub.f32 %v1745, %v1897
        %v1962 = vsub.f32 %v1752, %v1898
        %v1963 = vsub.f32 %v1759, %v1899
        %v1964 = vsub.f32 %v1766, %v1900
        %v1965 = vsub.f32 %v1773, %v1901
        %v1966 = vmul.f32 %v1902, %v1902
        %v1967 = vmul.f32 %v1903, %v1903
        %v1968 = vmul.f32 %v1904, %v1904
        %v1969 = vmul.f32 %v1905, %v1905
        %v1970 = vmul.f32 %v1906, %v1906
        %v1971 = vmul.f32 %v1907, %v1907
        %v1972 = vmul.f32 %v1908, %v1908
        %v1973 = vmul.f32 %v1909, %v1909
        %v1974 = vmul.f32 %v1910, %v1910
        %v1975 = vmul.f32 %v1911, %v1911
        %v1976 = vmul.f32 %v1912, %v1912
        %v1977 = vmul.f32 %v1913, %v1913
        %v1978 = vmul.f32 %v1914, %v1914
        %v1979 = vmul.f32 %v1915, %v1915
        %v1980 = vmul.f32 %v1916, %v1916
        %v1981 = vmul.f32 %v1917, %v1917
        %v1982 = vmul.f32 %v1918, %v1918
        %v1983 = vmul.f32 %v1919, %v1919
        %v1984 = vmul.f32 %v1920, %v1920
        %v1985 = vmul.f32 %v1921, %v1921
        %v1986 = vmul.f32 %v1922, %v1922
        %v1987 = vmul.f32 %v1923, %v1923
        %v1988 = vmul.f32 %v1924, %v1924
        %v1989 = vmul.f32 %v1925, %v1925
        %v1990 = vmul.f32 %v1926, %v1926
        %v1991 = vmul.f32 %v1927, %v1927
        %v1992 = vmul.f32 %v1928, %v1928
        %v1993 = vmul.f32 %v1929, %v1929
        %v1994 = vmul.f32 %v1930, %v1930
        %v1995 = vmul.f32 %v1931, %v1931
        %v1996 = vmul.f32 %v1932, %v1932
        %v1997 = vmul.f32 %v1933, %v1933
        %v1998 = vmul.f32 %v1934, %v1934
        %v1999 = vmul.f32 %v1935, %v1935
        %v2000 = vmul.f32 %v1936, %v1936
        %v2001 = vmul.f32 %v1937, %v1937
        %v2002 = vmul.f32 %v1938, %v1938
        %v2003 = vmul.f32 %v1939, %v1939
        %v2004 = vmul.f32 %v1940, %v1940
        %v2005 = vmul.f32 %v1941, %v1941
        %v2006 = vmul.f32 %v1942, %v1942
        %v2007 = vmul.f32 %v1943, %v1943
        %v2008 = vmul.f32 %v1944, %v1944
        %v2009 = vmul.f32 %v1945, %v1945
        %v2010 = vmul.f32 %v1946, %v1946
        %v2011 = vmul.f32 %v1947, %v1947
        %v2012 = vmul.f32 %v1948, %v1948
        %v2013 = vmul.f32 %v1949, %v1949
        %v2014 = vmul.f32 %v1950, %v1950
        %v2015 = vmul.f32 %v1951, %v1951
        %v2016 = vmul.f32 %v1952, %v1952
        %v2017 = vmul.f32 %v1953, %v1953
        %v2018 = vmul.f32 %v1954, %v1954
        %v2019 = vmul.f32 %v1955, %v1955
        %v2020 = vmul.f32 %v1956, %v1956
        %v2021 = vmul.f32 %v1957, %v1957
        %v2022 = vmul.f32 %v1958, %v1958
        %v2023 = vmul.f32 %v1959, %v1959
        %v2024 = vmul.f32 %v1960, %v1960
        %v2025 = vmul.f32 %v1961, %v1961
        %v2026 = vmul.f32 %v1962, %v1962
        %v2027 = vmul.f32 %v1963, %v1963
        %v2028 = vmul.f32 %v1964, %v1964
        %v2029 = vmul.f32 %v1965, %v1965
        %v2030 = vmul.f32 %v1774, %v1966
        %v2031 = vmul.f32 %v1775, %v1967
        %v2032 = vmul.f32 %v1776, %v1968
        %v2033 = vmul.f32 %v1777, %v1969
        %v2034 = vmul.f32 %v1778, %v1970
        %v2035 = vmul.f32 %v1779, %v1971
        %v2036 = vmul.f32 %v1780, %v1972
        %v2037 = vmul.f32 %v1781, %v1973
        %v2038 = vmul.f32 %v1782, %v1974
        %v2039 = vmul.f32 %v1783, %v1975
        %v2040 = vmul.f32 %v1784, %v1976
        %v2041 = vmul.f32 %v1785, %v1977
        %v2042 = vmul.f32 %v1786, %v1978
        %v2043 = vmul.f32 %v1787, %v1979
        %v2044 = vmul.f32 %v1788, %v1980
        %v2045 = vmul.f32 %v1789, %v1981
        %v2046 = vmul.f32 %v1790, %v1982
        %v2047 = vmul.f32 %v1791, %v1983
        %v2048 = vmul.f32 %v1792, %v1984
        %v2049 = vmul.f32 %v1793, %v1985
        %v2050 = vmul.f32 %v1794, %v1986
        %v2051 = vmul.f32 %v1795, %v1987
        %v2052 = vmul.f32 %v1796, %v1988
        %v2053 = vmul.f32 %v1797, %v1989
        %v2054 = vmul.f32 %v1798, %v1990
        %v2055 = vmul.f32 %v1799, %v1991
        %v2056 = vmul.f32 %v1800, %v1992
        %v2057 = vmul.f32 %v1801, %v1993
        %v2058 = vmul.f32 %v1802, %v1994
        %v2059 = vmul.f32 %v1803, %v1995
        %v2060 = vmul.f32 %v1804, %v1996
        %v2061 = vmul.f32 %v1805, %v1997
        %v2062 = vmul.f32 %v1806, %v1998
        %v2063 = vmul.f32 %v1807, %v1999
        %v2064 = vmul.f32 %v1808, %v2000
        %v2065 = vmul.f32 %v1809, %v2001
        %v2066 = vmul.f32 %v1810, %v2002
        %v2067 = vmul.f32 %v1811, %v2003
        %v2068 = vmul.f32 %v1812, %v2004
        %v2069 = vmul.f32 %v1813, %v2005
        %v2070 = vmul.f32 %v1814, %v2006
        %v2071 = vmul.f32 %v1815, %v2007
        %v2072 = vmul.f32 %v1816, %v2008
        %v2073 = vmul.f32 %v1817, %v2009
        %v2074 = vmul.f32 %v1818, %v2010
        %v2075 = vmul.f32 %v1819, %v2011
        %v2076 = vmul.f32 %v1820, %v2012
        %v2077 = vmul.f32 %v1821, %v2013
        %v2078 = vmul.f32 %v1822, %v2014
        %v2079 = vmul.f32 %v1823, %v2015
        %v2080 = vmul.f32 %v1824, %v2016
        %v2081 = vmul.f32 %v1825, %v2017
        %v2082 = vmul.f32 %v1826, %v2018
        %v2083 = vmul.f32 %v1827, %v2019
        %v2084 = vmul.f32 %v1828, %v2020
        %v2085 = vmul.f32 %v1829, %v2021
        %v2086 = vmul.f32 %v1830, %v2022
        %v2087 = vmul.f32 %v1831, %v2023
        %v2088 = vmul.f32 %v1832, %v2024
        %v2089 = vmul.f32 %v1833, %v2025
        %v2090 = vmul.f32 %v1834, %v2026
        %v2091 = vmul.f32 %v1835, %v2027
        %v2092 = vmul.f32 %v1836, %v2028
        %v2093 = vmul.f32 %v1837, %v2029
        %v2094 = vand.u32 2147483647, %v2030
        %v2095 = vand.u32 2147483647, %v2031
        %v2096 = vand.u32 2147483647, %v2032
        %v2097 = vand.u32 2147483647, %v2033
        %v2098 = vand.u32 2147483647, %v2034
        %v2099 = vand.u32 2147483647, %v2035
        %v2100 = vand.u32 2147483647, %v2036
        %v2101 = vand.u32 2147483647, %v2037
        %v2102 = vand.u32 2147483647, %v2038
        %v2103 = vand.u32 2147483647, %v2039
        %v2104 = vand.u32 2147483647, %v2040
        %v2105 = vand.u32 2147483647, %v2041
        %v2106 = vand.u32 2147483647, %v2042
        %v2107 = vand.u32 2147483647, %v2043
        %v2108 = vand.u32 2147483647, %v2044
        %v2109 = vand.u32 2147483647, %v2045
        %v2110 = vand.u32 2147483647, %v2046
        %v2111 = vand.u32 2147483647, %v2047
        %v2112 = vand.u32 2147483647, %v2048
        %v2113 = vand.u32 2147483647, %v2049
        %v2114 = vand.u32 2147483647, %v2050
        %v2115 = vand.u32 2147483647, %v2051
        %v2116 = vand.u32 2147483647, %v2052
        %v2117 = vand.u32 2147483647, %v2053
        %v2118 = vand.u32 2147483647, %v2054
        %v2119 = vand.u32 2147483647, %v2055
        %v2120 = vand.u32 2147483647, %v2056
        %v2121 = vand.u32 2147483647, %v2057
        %v2122 = vand.u32 2147483647, %v2058
        %v2123 = vand.u32 2147483647, %v2059
        %v2124 = vand.u32 2147483647, %v2060
        %v2125 = vand.u32 2147483647, %v2061
        %v2126 = vand.u32 2147483647, %v2062
        %v2127 = vand.u32 2147483647, %v2063
        %v2128 = vand.u32 2147483647, %v2064
        %v2129 = vand.u32 2147483647, %v2065
        %v2130 = vand.u32 2147483647, %v2066
        %v2131 = vand.u32 2147483647, %v2067
        %v2132 = vand.u32 2147483647, %v2068
        %v2133 = vand.u32 2147483647, %v2069
        %v2134 = vand.u32 2147483647, %v2070
        %v2135 = vand.u32 2147483647, %v2071
        %v2136 = vand.u32 2147483647, %v2072
        %v2137 = vand.u32 2147483647, %v2073
        %v2138 = vand.u32 2147483647, %v2074
        %v2139 = vand.u32 2147483647, %v2075
        %v2140 = vand.u32 2147483647, %v2076
        %v2141 = vand.u32 2147483647, %v2077
        %v2142 = vand.u32 2147483647, %v2078
        %v2143 = vand.u32 2147483647, %v2079
        %v2144 = vand.u32 2147483647, %v2080
        %v2145 = vand.u32 2147483647, %v2081
        %v2146 = vand.u32 2147483647, %v2082
        %v2147 = vand.u32 2147483647, %v2083
        %v2148 = vand.u32 2147483647, %v2084
        %v2149 = vand.u32 2147483647, %v2085
        %v2150 = vand.u32 2147483647, %v2086
        %v2151 = vand.u32 2147483647, %v2087
        %v2152 = vand.u32 2147483647, %v2088
        %v2153 = vand.u32 2147483647, %v2089
        %v2154 = vand.u32 2147483647, %v2090
        %v2155 = vand.u32 2147483647, %v2091
        %v2156 = vand.u32 2147483647, %v2092
        %v2157 = vand.u32 2147483647, %v2093
        %v2158 = vadd.f32 %v2094, %v2095
        %2159 = vadd.xlane.f32.xlu0 %v2158
        %v2160 = vpop.xlane.xlu0 %2159
        %v2161 = vadd.f32 %v2096, %v2097
        %2162 = vadd.xlane.f32.xlu0 %v2161
        %v2163 = vpop.xlane.xlu0 %2162
        %v2164 = vadd.f32 %v2098, %v2099
        %2165 = vadd.xlane.f32.xlu0 %v2164
        %v2166 = vpop.xlane.xlu0 %2165
        %v2167 = vadd.f32 %v2100, %v2101
        %2168 = vadd.xlane.f32.xlu0 %v2167
        %v2169 = vpop.xlane.xlu0 %2168
        %v2170 = vadd.f32 %v2102, %v2103
        %2171 = vadd.xlane.f32.xlu0 %v2170
        %v2172 = vpop.xlane.xlu0 %2171
        %v2173 = vadd.f32 %v2104, %v2105
        %2174 = vadd.xlane.f32.xlu0 %v2173
        %v2175 = vpop.xlane.xlu0 %2174
        %v2176 = vadd.f32 %v2106, %v2107
        %2177 = vadd.xlane.f32.xlu0 %v2176
        %v2178 = vpop.xlane.xlu0 %2177
        %v2179 = vadd.f32 %v2108, %v2109
        %2180 = vadd.xlane.f32.xlu0 %v2179
        %v2181 = vpop.xlane.xlu0 %2180
        %v2182 = vadd.f32 %v2110, %v2111
        %2183 = vadd.xlane.f32.xlu0 %v2182
        %v2184 = vpop.xlane.xlu0 %2183
        %v2185 = vadd.f32 %v2112, %v2113
        %2186 = vadd.xlane.f32.xlu0 %v2185
        %v2187 = vpop.xlane.xlu0 %2186
        %v2188 = vadd.f32 %v2114, %v2115
        %2189 = vadd.xlane.f32.xlu0 %v2188
        %v2190 = vpop.xlane.xlu0 %2189
        %v2191 = vadd.f32 %v2116, %v2117
        %2192 = vadd.xlane.f32.xlu0 %v2191
        %v2193 = vpop.xlane.xlu0 %2192
        %v2194 = vadd.f32 %v2118, %v2119
        %2195 = vadd.xlane.f32.xlu0 %v2194
        %v2196 = vpop.xlane.xlu0 %2195
        %v2197 = vadd.f32 %v2120, %v2121
        %2198 = vadd.xlane.f32.xlu0 %v2197
        %v2199 = vpop.xlane.xlu0 %2198
        %v2200 = vadd.f32 %v2122, %v2123
        %2201 = vadd.xlane.f32.xlu0 %v2200
        %v2202 = vpop.xlane.xlu0 %2201
        %v2203 = vadd.f32 %v2124, %v2125
        %2204 = vadd.xlane.f32.xlu0 %v2203
        %v2205 = vpop.xlane.xlu0 %2204
        %v2206 = vadd.f32 %v2126, %v2127
        %2207 = vadd.xlane.f32.xlu0 %v2206
        %v2208 = vpop.xlane.xlu0 %2207
        %v2209 = vadd.f32 %v2128, %v2129
        %2210 = vadd.xlane.f32.xlu0 %v2209
        %v2211 = vpop.xlane.xlu0 %2210
        %v2212 = vadd.f32 %v2130, %v2131
        %2213 = vadd.xlane.f32.xlu0 %v2212
        %v2214 = vpop.xlane.xlu0 %2213
        %v2215 = vadd.f32 %v2132, %v2133
        %2216 = vadd.xlane.f32.xlu0 %v2215
        %v2217 = vpop.xlane.xlu0 %2216
        %v2218 = vadd.f32 %v2134, %v2135
        %2219 = vadd.xlane.f32.xlu0 %v2218
        %v2220 = vpop.xlane.xlu0 %2219
        %v2221 = vadd.f32 %v2136, %v2137
        %2222 = vadd.xlane.f32.xlu0 %v2221
        %v2223 = vpop.xlane.xlu0 %2222
        %v2224 = vadd.f32 %v2138, %v2139
        %2225 = vadd.xlane.f32.xlu0 %v2224
        %v2226 = vpop.xlane.xlu0 %2225
        %v2227 = vadd.f32 %v2140, %v2141
        %2228 = vadd.xlane.f32.xlu0 %v2227
        %v2229 = vpop.xlane.xlu0 %2228
        %v2230 = vadd.f32 %v2142, %v2143
        %2231 = vadd.xlane.f32.xlu0 %v2230
        %v2232 = vpop.xlane.xlu0 %2231
        %v2233 = vadd.f32 %v2144, %v2145
        %2234 = vadd.xlane.f32.xlu0 %v2233
        %v2235 = vpop.xlane.xlu0 %2234
        %v2236 = vadd.f32 %v2146, %v2147
        %2237 = vadd.xlane.f32.xlu0 %v2236
        %v2238 = vpop.xlane.xlu0 %2237
        %v2239 = vadd.f32 %v2148, %v2149
        %2240 = vadd.xlane.f32.xlu0 %v2239
        %v2241 = vpop.xlane.xlu0 %2240
        %v2242 = vadd.f32 %v2150, %v2151
        %2243 = vadd.xlane.f32.xlu0 %v2242
        %v2244 = vpop.xlane.xlu0 %2243
        %v2245 = vadd.f32 %v2152, %v2153
        %2246 = vadd.xlane.f32.xlu0 %v2245
        %v2247 = vpop.xlane.xlu0 %2246
        %v2248 = vadd.f32 %v2154, %v2155
        %2249 = vadd.xlane.f32.xlu0 %v2248
        %v2250 = vpop.xlane.xlu0 %2249
        %v2251 = vadd.f32 %v2156, %v2157
        %2252 = vadd.xlane.f32.xlu0 %v2251
        %v2253 = vpop.xlane.xlu0 %2252
        %v2254 = vadd.f32 %v2160, %v2163
        %v2255 = vadd.f32 %v2254, %v2166
        %v2256 = vadd.f32 %v2255, %v2169
        %v2257 = vadd.f32 %v2256, %v2172
        %v2258 = vadd.f32 %v2257, %v2175
        %v2259 = vadd.f32 %v2258, %v2178
        %v2260 = vadd.f32 %v2259, %v2181
        %v2261 = vadd.f32 %v2260, %v2184
        %v2262 = vadd.f32 %v2261, %v2187
        %v2263 = vadd.f32 %v2262, %v2190
        %v2264 = vadd.f32 %v2263, %v2193
        %v2265 = vadd.f32 %v2264, %v2196
        %v2266 = vadd.f32 %v2265, %v2199
        %v2267 = vadd.f32 %v2266, %v2202
        %v2268 = vadd.f32 %v2267, %v2205
        %v2269 = vadd.f32 %v2268, %v2208
        %v2270 = vadd.f32 %v2269, %v2211
        %v2271 = vadd.f32 %v2270, %v2214
        %v2272 = vadd.f32 %v2271, %v2217
        %v2273 = vadd.f32 %v2272, %v2220
        %v2274 = vadd.f32 %v2273, %v2223
        %v2275 = vadd.f32 %v2274, %v2226
        %v2276 = vadd.f32 %v2275, %v2229
        %v2277 = vadd.f32 %v2276, %v2232
        %v2278 = vadd.f32 %v2277, %v2235
        %v2279 = vadd.f32 %v2278, %v2238
        %v2280 = vadd.f32 %v2279, %v2241
        %v2281 = vadd.f32 %v2280, %v2244
        %v2282 = vadd.f32 %v2281, %v2247
        %v2283 = vadd.f32 %v2282, %v2250
        %v2284 = vadd.f32 %v2283, %v2253
        %v2285 = vrot.slane %v2284, 4
        %v2286 = vadd.f32 %v2284, %v2285
        %v2287 = vrot.slane %v2286, 2
        %v2288 = vadd.f32 %v2286, %v2287
        %v2289 = vrot.slane %v2288, 1
        %v2290 = vadd.f32 %v2288, %v2289
        %v2291 = vld [vmem:[#allocation2] sm:$0x1]
        %v2292 = vadd.f32 %v2291, %v2290
        %vm2293 = vcmask 0
        %2294 = vst.msk [vmem:[#allocation2] sm:$0x1] %vm2293, %v2292
        %p2295 = scmp.eq.s32.totalorder %s27, 1
        // Predicated region
        $region49: #{tpu_custom_call.1} parent=39 // pred_check
          %p2296 = pneg %p2295
        $region50: #{tpu_custom_call.1} parent=39 // pred_check_branch
          %2298 = sbr.rel (%p2296) target = $region52
        $region51: #{tpu_custom_call.1} parent=39 // pred_region
          %v2299 = vld [vmem:[#allocation2] sm:$0x1]
          %2301 = vset.pattern.permute.xlu0 0
          %2302 = vperm.xlu0 %2301, %v2299
          %v2303 = vpop.permute.xlu0 %2302
          %v2305 = vlaneseq
          %v2306 = vshrl.u32 %v2305, 7
          %v2307 = vsub.s32 0, %v2306
          %v2308 = vrot.slane %v2303, %v2307
          %2309 = vst [vmem:[%s320] sm:$0x1] %v2308
        $region52: #{tpu_custom_call.1} parent=39 // pred_fallthru
          _
        %s2310 = sand.u32 %s174, 1
        %s2311 = scalar_lea.sflag [#allocation5], %s2310
        %s2312 = sand.u32 %s174, 1
        %s2313 = scalar_lea.vmem [#allocation6], %s2312
        // Predicated region
        $region53: #{tpu_custom_call.1} parent=39 // pred_check
          %p2314 = pneg %p184
        $region54: #{tpu_custom_call.1} parent=39 // pred_check_branch
          %2316 = sbr.rel (%p2314) target = $region56
        $region55: #{tpu_custom_call.1} parent=39 // pred_region
          %s2318 = ssub.s32 16, 16
          %2319 = vsyncadd %s2311, %s2318
          %s2320 = smul.addr %s26, 16
          %s2321 = scalar_lea.hbm %s5, %s2320
          %s2323 = sshll.u32 %s2313, 4
          %s2324 = int_to_ptr.vmem [resolvable:$true] %s2323
          %2326 = dma.vmem_to_hbm [thread:$0]  %s2324, 16, %s2321, %s2311
        $region56: #{tpu_custom_call.1} parent=39 // pred_fallthru
          _
      $region40: #{tpu_custom_call.1} parent=5 // pred_fallthru
        _
      %p2327 = scmp.le.s32.totalorder 2, %s17
      // Predicated region
      $region57: #{tpu_custom_call.1} parent=5 // pred_check
        %p2328 = pneg %p2327
      $region58: #{tpu_custom_call.1} parent=5 // pred_check_branch
        %2330 = sbr.rel (%p2328) target = $region60
      $region59: #{tpu_custom_call.1} parent=5 // pred_region
        %s2331 = ssub.s32 %s17, 2
        // Predicated region
        $region61: #{tpu_custom_call.1} parent=59 // pred_check
          %p2332 = pneg %p190
        $region62: #{tpu_custom_call.1} parent=59 // pred_check_branch
          %2334 = sbr.rel (%p2332) target = $region64
        $region63: #{tpu_custom_call.1} parent=59 // pred_region
          %s2335 = sand.u32 %s175, 1
          %s2336 = scalar_lea.sflag [#allocation5], %s2335
          %s2337 = sand.u32 %s175, 1
          %s2338 = scalar_lea.vmem [#allocation6], %s2337
          %2339 = dma.done %s2336, 16
        $region64: #{tpu_custom_call.1} parent=59 // pred_fallthru
          _
      $region60: #{tpu_custom_call.1} parent=5 // pred_fallthru
        _
    $region6: #{tpu_custom_call.1} parent=1 // loop_footer
      %s21 = sadd.s32 1, %s17
    $region7: #{tpu_custom_call.1} parent=1 // loop_footer_branch
      %16 = sbr.rel target = $region3
    $region8: #{tpu_custom_call.1} parent=1 // loop_exit
      _
    %2340 = vsyncpa [#allocation4], 1
    %s2341 = scalar_lea.sflag [#allocation4], 1
    %2342 = vsyncpa %s2341, 1
    %2343 = vsyncpa [#allocation5], 1
    %s2344 = scalar_lea.sflag [#allocation5], 1
    %2345 = vsyncpa %s2344, 1

</llo_original>
